<compile_context>
chip_gen: v5e
topology: v5e:2x2
jax: 0.10.0
libtpu: 0.0.40
codegen_flags: <defaults>
</compile_context>

<pallas_src>
import jax
import jax.numpy as jnp
from jax.experimental import pallas as pl
from jax.experimental.pallas import tpu as pltpu


def _flash_attention_kernel(xq_ref, xkv_ref, wq_ref, wk_ref, wv_ref, wp_ref, b_ref,
                            o_ref, q_scr, m_scr, l_scr, acc_scr, o_scr):
    """Grid = (batch, q_tile, head, kv_tile); kv_tile innermost.

    xq_ref : (1, TQ, C)          query-side activations
    xkv_ref: (1, TK, C)          key/value-side activations
    wq_ref : (1, C, hd)          per-head Q weight (softmax scale pre-folded)
    wk_ref : (1, C, hd)          per-head K weight
    wv_ref : (1, C, hd)          per-head V weight
    wp_ref : (1, hd, in_dim)     per-head rows of the output projection
    b_ref  : (1, in_dim)         output projection bias (f32)
    o_ref  : (1, TQ, in_dim)     output tile (resident across head/kv axes)
    scratch: q (TQ,hd) compute-dtype; m,l (TQ,1) f32; acc (TQ,hd) f32;
             o_scr (TQ,in_dim) f32 output-projection accumulator.
    """
    h = pl.program_id(2)
    ki = pl.program_id(3)
    nh = pl.num_programs(2)
    nk = pl.num_programs(3)

    # ---- fresh (batch, q-tile): zero the output-projection accumulator ----
    @pl.when(jnp.logical_and(h == 0, ki == 0))
    def _zero_output():
        o_scr[...] = jnp.zeros_like(o_scr)

    # ---- fresh head: project this q tile once, reset online-softmax state --
    @pl.when(ki == 0)
    def _init_head():
        # Scale is already folded into wq by the wrapper.
        q = jnp.dot(xq_ref[0], wq_ref[0], preferred_element_type=jnp.float32)
        q_scr[...] = q.astype(q_scr.dtype)
        m_scr[...] = jnp.full_like(m_scr, -jnp.inf)
        l_scr[...] = jnp.zeros_like(l_scr)
        acc_scr[...] = jnp.zeros_like(acc_scr)

    # ---- K/V projection for this kv tile (compute dtype MXU, f32 accum) ----
    xkv = xkv_ref[0]
    k = jnp.dot(xkv, wk_ref[0], preferred_element_type=jnp.float32).astype(q_scr.dtype)
    v = jnp.dot(xkv, wv_ref[0], preferred_element_type=jnp.float32).astype(q_scr.dtype)

    # ---- online softmax update ---------------------------------------------
    q = q_scr[...]                                               # (TQ, hd)
    # q @ k^T without materializing a transpose: contract the last dims.
    s = jax.lax.dot_general(q, k, (((1,), (1,)), ((), ())),
                            preferred_element_type=jnp.float32)  # (TQ, TK)

    m_prev = m_scr[...]                                          # (TQ, 1)
    m_new = jnp.maximum(m_prev, jnp.max(s, axis=-1, keepdims=True))
    alpha = jnp.exp(m_prev - m_new)                              # (TQ, 1)
    p = jnp.exp(s - m_new)                                       # (TQ, TK) f32
    l_scr[...] = alpha * l_scr[...] + jnp.sum(p, axis=-1, keepdims=True)
    acc_scr[...] = alpha * acc_scr[...] + jnp.dot(
        p.astype(v.dtype), v, preferred_element_type=jnp.float32)
    m_scr[...] = m_new

    # ---- last kv tile: finish softmax, fold this head into the projection --
    @pl.when(ki == nk - 1)
    def _finalize_head():
        inv_l = pl.reciprocal(l_scr[...], approx=True)           # EUP slot
        ctx = (acc_scr[...] * inv_l).astype(wp_ref.dtype)        # (TQ, hd)
        o_scr[...] += jnp.dot(ctx, wp_ref[0], preferred_element_type=jnp.float32)

        @pl.when(h == nh - 1)
        def _write_out():
            o_ref[0] = (o_scr[...] + b_ref[...]).astype(o_ref.dtype)


def attention_pallas(x, w_qkv_t, w_proj_t, b_proj, *, num_heads, in_dim, scale,
                     compute_dtype=None, tq=128, tk=128):
    """x: (B, N, C) -> (B, N, in_dim).

    w_qkv_t : (C, 3*in_dim)  transposed Linear weight (no bias)
    w_proj_t: (in_dim, in_dim) transposed Linear weight
    b_proj  : (in_dim,)
    compute_dtype: dtype fed to the MXU (e.g. jnp.bfloat16); accumulation and
                   softmax are always f32.
    """
    B, N, C = x.shape
    head_dim = in_dim // num_heads
    if compute_dtype is None:
        compute_dtype = x.dtype
    itemsize = jnp.dtype(compute_dtype).itemsize

    # Sequence tiles. TODO(synk): pad N + mask softmax for ragged N (e.g. 197);
    # here we fall back to a full-extent tile when N is not tile-divisible.
    tq = tq if N % tq == 0 else N
    tk = tk if N % tk == 0 else N
    nq, nk = N // tq, N // tk

    # Re-lay-out the fused QKV weight per head: (H, C, hd) for q/k/v, and fold
    # the softmax scale into the Q weight ((x @ Wq)*scale == x @ (Wq*scale)).
    w3 = w_qkv_t.reshape(C, 3, num_heads, head_dim)
    wq = (jnp.transpose(w3[:, 0], (1, 0, 2)) * scale).astype(compute_dtype)  # (H,C,hd)
    wk = jnp.transpose(w3[:, 1], (1, 0, 2)).astype(compute_dtype)            # (H,C,hd)
    wv = jnp.transpose(w3[:, 2], (1, 0, 2)).astype(compute_dtype)            # (H,C,hd)
    wp = w_proj_t.reshape(num_heads, head_dim, in_dim).astype(compute_dtype) # (H,hd,in_dim)
    b2 = b_proj.reshape(1, in_dim).astype(jnp.float32)
    xc = x.astype(compute_dtype)

    grid = (B, nq, num_heads, nk)

    # Advisory cost estimate for XLA's scheduler.
    flops = int(2 * B * N * C * in_dim * (1 + 2 * nq)     # q proj + k/v proj (recomputed per q tile)
                + 4 * B * N * N * in_dim                  # scores + attn @ v
                + 2 * B * N * in_dim * in_dim)            # output projection
    transcendentals = int(B * num_heads * N * N)
    bytes_accessed = int(xc.size * itemsize * (1 + num_heads * nq)
                         + (wq.size + wk.size + wv.size + wp.size) * itemsize
                         + B * N * in_dim * itemsize)

    return pl.pallas_call(
        _flash_attention_kernel,
        out_shape=jax.ShapeDtypeStruct((B, N, in_dim), compute_dtype),
        grid_spec=pltpu.PrefetchScalarGridSpec(
            num_scalar_prefetch=0,
            grid=grid,
            in_specs=[
                pl.BlockSpec((1, tq, C), lambda b, qi, h, ki: (b, qi, 0)),        # x (query side)
                pl.BlockSpec((1, tk, C), lambda b, qi, h, ki: (b, ki, 0)),        # x (key/value side)
                pl.BlockSpec((1, C, head_dim), lambda b, qi, h, ki: (h, 0, 0)),   # Wq (scaled)
                pl.BlockSpec((1, C, head_dim), lambda b, qi, h, ki: (h, 0, 0)),   # Wk
                pl.BlockSpec((1, C, head_dim), lambda b, qi, h, ki: (h, 0, 0)),   # Wv
                pl.BlockSpec((1, head_dim, in_dim), lambda b, qi, h, ki: (h, 0, 0)),  # Wproj rows
                pl.BlockSpec((1, in_dim), lambda b, qi, h, ki: (0, 0)),           # bias
            ],
            out_specs=pl.BlockSpec((1, tq, in_dim), lambda b, qi, h, ki: (b, qi, 0)),
            scratch_shapes=[
                pltpu.VMEM((tq, head_dim), compute_dtype),  # q tile (scale folded)
                pltpu.VMEM((tq, 1), jnp.float32),           # running max
                pltpu.VMEM((tq, 1), jnp.float32),           # running denom
                pltpu.VMEM((tq, head_dim), jnp.float32),    # attention accumulator
                pltpu.VMEM((tq, in_dim), jnp.float32),      # output-projection accumulator
            ],
        ),
        compiler_params=pltpu.CompilerParams(
            dimension_semantics=("parallel", "parallel", "arbitrary", "arbitrary")),
        cost_estimate=pl.CostEstimate(flops=flops, transcendentals=transcendentals,
                                      bytes_accessed=bytes_accessed),
    )(xc, xc, wq, wk, wv, wp, b2)


def attention_reference(x, w_qkv_t, w_proj_t, b_proj, *, num_heads, in_dim, scale):
    """Pure-JAX reference mirroring the PyTorch forward exactly."""
    B, N, C = x.shape
    head_dim = in_dim // num_heads
    qkv = x @ w_qkv_t                                              # (B, N, 3*in_dim)
    qkv = qkv.reshape(B, N, 3, num_heads, head_dim).transpose(2, 0, 3, 1, 4)
    q, k, v = qkv[0], qkv[1], qkv[2]                               # (B, H, N, hd)
    attn = jnp.einsum("bhnd,bhmd->bhnm", q, k) * scale
    attn = jax.nn.softmax(attn, axis=-1)
    out = jnp.einsum("bhnm,bhmd->bhnd", attn, v)                   # (B, H, N, hd)
    out = out.transpose(0, 2, 1, 3).reshape(B, N, in_dim)
    return out @ w_proj_t + b_proj


if __name__ == "__main__":
    # Small but TPU-tile-friendly shapes consistent with the module.
    B, N = 2, 256
    dim = 128          # C
    num_heads = 4
    in_dim = 128       # head_dim = 32
    # NOTE: torch computes scale from dim // num_heads (not in_dim // num_heads).
    scale = (dim // num_heads) ** (-0.5)

    key = jax.random.PRNGKey(0)
    k_x, k_wqkv, k_wproj, k_bproj = jax.random.split(key, 4)

    x = jax.random.normal(k_x, (B, N, dim), dtype=jnp.float32)
    # Linear weights stored transposed: (in_features, out_features).
    w_qkv_t = jax.random.normal(k_wqkv, (dim, 3 * in_dim), dtype=jnp.float32) * 0.05
    w_proj_t = jax.random.normal(k_wproj, (in_dim, in_dim), dtype=jnp.float32) * 0.05
    b_proj = jax.random.normal(k_bproj, (in_dim,), dtype=jnp.float32) * 0.05
    # TODO(synk): attn_drop / proj_drop are Dropout(0.0) -> identity; not modeled.

    ref = attention_reference(x, w_qkv_t, w_proj_t, b_proj,
                              num_heads=num_heads, in_dim=in_dim, scale=scale)

    # f32 compute path.
    out = attention_pallas(x, w_qkv_t, w_proj_t, b_proj,
                           num_heads=num_heads, in_dim=in_dim, scale=scale,
                           compute_dtype=jnp.float32)
    out = jax.block_until_ready(out)
    assert out.shape == (B, N, in_dim)
    assert jnp.allclose(out, ref, atol=2e-3, rtol=2e-3), "f32 mismatch vs reference"

    # bf16 MXU path (f32 accumulation / f32 softmax inside the kernel).
    out_bf16 = attention_pallas(x, w_qkv_t, w_proj_t, b_proj,
                                num_heads=num_heads, in_dim=in_dim, scale=scale,
                                compute_dtype=jnp.bfloat16)
    out_bf16 = jax.block_until_ready(out_bf16)
    assert jnp.allclose(out_bf16.astype(jnp.float32), ref,
                        atol=5e-2, rtol=5e-2), "bf16 mismatch vs reference"

    print("KERNEL_OK")
</pallas_src>

<mosaic_0001>
module attributes {stable_mosaic.version = 11 : i64} {
  func.func @_flash_attention_kernel(%arg0: i32, %arg1: i32, %arg2: i32, %arg3: i32, %arg4: memref<1x128x128xf32, #tpu.memory_space<vmem>>, %arg5: memref<1x128x128xf32, #tpu.memory_space<vmem>>, %arg6: memref<1x128x32xf32, #tpu.memory_space<vmem>>, %arg7: memref<1x128x32xf32, #tpu.memory_space<vmem>>, %arg8: memref<1x128x32xf32, #tpu.memory_space<vmem>>, %arg9: memref<1x32x128xf32, #tpu.memory_space<vmem>>, %arg10: memref<1x128xf32, #tpu.memory_space<vmem>>, %arg11: memref<1x128x128xf32, #tpu.memory_space<vmem>>, %arg12: memref<128x32xf32, #tpu.memory_space<vmem>>, %arg13: memref<128x1xf32, #tpu.memory_space<vmem>>, %arg14: memref<128x1xf32, #tpu.memory_space<vmem>>, %arg15: memref<128x32xf32, #tpu.memory_space<vmem>>, %arg16: memref<128x128xf32, #tpu.memory_space<vmem>>) attributes {dimension_semantics = [#tpu.dimension_semantics<parallel>, #tpu.dimension_semantics<parallel>, #tpu.dimension_semantics<arbitrary>, #tpu.dimension_semantics<arbitrary>], iteration_bounds = array<i64: 2, 2, 4, 2>, scalar_prefetch = 0 : i64, scratch_operands = 5 : i64, tpu.core_type = #tpu.core_type<tc>, window_params = [{transform_indices = @transform_0, window_bounds = array<i64: 1, 128, 128>}, {transform_indices = @transform_1, window_bounds = array<i64: 1, 128, 128>}, {transform_indices = @transform_2, window_bounds = array<i64: 1, 128, 32>}, {transform_indices = @transform_3, window_bounds = array<i64: 1, 128, 32>}, {transform_indices = @transform_4, window_bounds = array<i64: 1, 128, 32>}, {transform_indices = @transform_5, window_bounds = array<i64: 1, 32, 128>}, {pipeline_mode = #tpu.pipeline_mode<synchronous>, transform_indices = @transform_6, window_bounds = array<i64: 1, 128>}, {transform_indices = @transform_7, window_bounds = array<i64: 1, 128, 128>}]} {
    %c0_i32 = arith.constant 0 : i32
    %0 = arith.cmpi eq, %arg2, %c0_i32 : i32
    %c0_i32_0 = arith.constant 0 : i32
    %1 = arith.cmpi eq, %arg3, %c0_i32_0 : i32
    %2 = arith.andi %0, %1 : i1
    %3 = arith.extui %2 : i1 to i32
    %c0_i32_1 = arith.constant 0 : i32
    %4 = arith.cmpi ne, %3, %c0_i32_1 : i32
    scf.if %4 {
      %cst_32 = arith.constant 0.000000e+00 : f32
      %43 = vector.broadcast %cst_32 : f32 to vector<128x128xf32>
      %c0_33 = arith.constant 0 : index
      %c0_34 = arith.constant 0 : index
      %44 = vector.load %arg16[%c0_33, %c0_34] : memref<128x128xf32, #tpu.memory_space<vmem>>, vector<128x128xf32>
      tpu.vector_store %arg16[%c0_33, %c0_34], %43 {strides = array<i32>} : memref<128x128xf32, #tpu.memory_space<vmem>>, vector<128x128xf32>,
    } else {
    }
    %c0_i32_2 = arith.constant 0 : i32
    %5 = arith.cmpi eq, %arg3, %c0_i32_2 : i32
    %6 = arith.extui %5 : i1 to i32
    %c0_i32_3 = arith.constant 0 : i32
    %7 = arith.cmpi ne, %6, %c0_i32_3 : i32
    scf.if %7 {
      %c0_32 = arith.constant 0 : index
      %c0_33 = arith.constant 0 : index
      %c0_34 = arith.constant 0 : index
      %43 = vector.load %arg4[%c0_32, %c0_33, %c0_34] : memref<1x128x128xf32, #tpu.memory_space<vmem>>, vector<1x128x128xf32>
      %44 = vector.shape_cast %43 : vector<1x128x128xf32> to vector<128x128xf32>
      %c0_35 = arith.constant 0 : index
      %c0_36 = arith.constant 0 : index
      %c0_37 = arith.constant 0 : index
      %45 = vector.load %arg6[%c0_35, %c0_36, %c0_37] : memref<1x128x32xf32, #tpu.memory_space<vmem>>, vector<1x128x32xf32>
      %46 = vector.shape_cast %45 : vector<1x128x32xf32> to vector<128x32xf32>
      %cst_38 = arith.constant dense<0.000000e+00> : vector<128x32xf32>
      %47 = tpu.matmul %44, %46, %cst_38 {dimension_numbers = #tpu.dot_dimension_numbers<[1], [0], [0], [1], [0, 0, 1, 1], [], []>} : vector<128x128xf32>, vector<128x32xf32>, vector<128x32xf32> -> vector<128x32xf32>
      %c0_39 = arith.constant 0 : index
      %c0_40 = arith.constant 0 : index
      %48 = vector.load %arg12[%c0_39, %c0_40] : memref<128x32xf32, #tpu.memory_space<vmem>>, vector<128x32xf32>
      tpu.vector_store %arg12[%c0_39, %c0_40], %47 {strides = array<i32>} : memref<128x32xf32, #tpu.memory_space<vmem>>, vector<128x32xf32>,
      %cst_41 = arith.constant 0xFF800000 : f32
      %49 = vector.broadcast %cst_41 : f32 to vector<128x1xf32>
      %c0_42 = arith.constant 0 : index
      %c0_43 = arith.constant 0 : index
      %50 = vector.load %arg13[%c0_42, %c0_43] : memref<128x1xf32, #tpu.memory_space<vmem>>, vector<128x1xf32>
      tpu.vector_store %arg13[%c0_42, %c0_43], %49 {strides = array<i32>} : memref<128x1xf32, #tpu.memory_space<vmem>>, vector<128x1xf32>,
      %cst_44 = arith.constant 0.000000e+00 : f32
      %51 = vector.broadcast %cst_44 : f32 to vector<128x1xf32>
      %c0_45 = arith.constant 0 : index
      %c0_46 = arith.constant 0 : index
      %52 = vector.load %arg14[%c0_45, %c0_46] : memref<128x1xf32, #tpu.memory_space<vmem>>, vector<128x1xf32>
      tpu.vector_store %arg14[%c0_45, %c0_46], %51 {strides = array<i32>} : memref<128x1xf32, #tpu.memory_space<vmem>>, vector<128x1xf32>,
      %cst_47 = arith.constant 0.000000e+00 : f32
      %53 = vector.broadcast %cst_47 : f32 to vector<128x32xf32>
      %c0_48 = arith.constant 0 : index
      %c0_49 = arith.constant 0 : index
      %54 = vector.load %arg15[%c0_48, %c0_49] : memref<128x32xf32, #tpu.memory_space<vmem>>, vector<128x32xf32>
      tpu.vector_store %arg15[%c0_48, %c0_49], %53 {strides = array<i32>} : memref<128x32xf32, #tpu.memory_space<vmem>>, vector<128x32xf32>,
    } else {
    }
    %c0 = arith.constant 0 : index
    %c0_4 = arith.constant 0 : index
    %c0_5 = arith.constant 0 : index
    %8 = vector.load %arg5[%c0, %c0_4, %c0_5] : memref<1x128x128xf32, #tpu.memory_space<vmem>>, vector<1x128x128xf32>
    %9 = vector.shape_cast %8 : vector<1x128x128xf32> to vector<128x128xf32>
    %c0_6 = arith.constant 0 : index
    %c0_7 = arith.constant 0 : index
    %c0_8 = arith.constant 0 : index
    %10 = vector.load %arg7[%c0_6, %c0_7, %c0_8] : memref<1x128x32xf32, #tpu.memory_space<vmem>>, vector<1x128x32xf32>
    %11 = vector.shape_cast %10 : vector<1x128x32xf32> to vector<128x32xf32>
    %cst = arith.constant dense<0.000000e+00> : vector<128x32xf32>
    %12 = tpu.matmul %9, %11, %cst {dimension_numbers = #tpu.dot_dimension_numbers<[1], [0], [0], [1], [0, 0, 1, 1], [], []>} : vector<128x128xf32>, vector<128x32xf32>, vector<128x32xf32> -> vector<128x32xf32>
    %c0_9 = arith.constant 0 : index
    %c0_10 = arith.constant 0 : index
    %c0_11 = arith.constant 0 : index
    %13 = vector.load %arg8[%c0_9, %c0_10, %c0_11] : memref<1x128x32xf32, #tpu.memory_space<vmem>>, vector<1x128x32xf32>
    %14 = vector.shape_cast %13 : vector<1x128x32xf32> to vector<128x32xf32>
    %cst_12 = arith.constant dense<0.000000e+00> : vector<128x32xf32>
    %15 = tpu.matmul %9, %14, %cst_12 {dimension_numbers = #tpu.dot_dimension_numbers<[1], [0], [0], [1], [0, 0, 1, 1], [], []>} : vector<128x128xf32>, vector<128x32xf32>, vector<128x32xf32> -> vector<128x32xf32>
    %c0_13 = arith.constant 0 : index
    %c0_14 = arith.constant 0 : index
    %16 = vector.load %arg12[%c0_13, %c0_14] : memref<128x32xf32, #tpu.memory_space<vmem>>, vector<128x32xf32>
    %cst_15 = arith.constant dense<0.000000e+00> : vector<128x128xf32>
    %17 = tpu.matmul %16, %12, %cst_15 {dimension_numbers = #tpu.dot_dimension_numbers<[1], [1], [0], [0], [0, 0, 1, 0], [], []>} : vector<128x32xf32>, vector<128x32xf32>, vector<128x128xf32> -> vector<128x128xf32>
    %c0_16 = arith.constant 0 : index
    %c0_17 = arith.constant 0 : index
    %18 = vector.load %arg13[%c0_16, %c0_17] : memref<128x1xf32, #tpu.memory_space<vmem>>, vector<128x1xf32>
    %cst_18 = arith.constant dense<0xFF800000> : vector<128xf32>
    %19 = vector.multi_reduction <maximumf>, %17, %cst_18 [1] : vector<128x128xf32> to vector<128xf32>
    %20 = vector.shape_cast %19 : vector<128xf32> to vector<128x1xf32>
    %21 = arith.maximumf %18, %20 : vector<128x1xf32>
    %22 = arith.subf %18, %21 : vector<128x1xf32>
    %23 = math.exp %22 : vector<128x1xf32>
    %24 = vector.broadcast %21 : vector<128x1xf32> to vector<128x128xf32>
    %25 = arith.subf %17, %24 : vector<128x128xf32>
    %26 = math.exp %25 : vector<128x128xf32>
    %c0_19 = arith.constant 0 : index
    %c0_20 = arith.constant 0 : index
    %27 = vector.load %arg14[%c0_19, %c0_20] : memref<128x1xf32, #tpu.memory_space<vmem>>, vector<128x1xf32>
    %28 = arith.mulf %23, %27 : vector<128x1xf32>
    %cst_21 = arith.constant dense<0.000000e+00> : vector<128xf32>
    %29 = vector.multi_reduction <add>, %26, %cst_21 [1] : vector<128x128xf32> to vector<128xf32>
    %30 = vector.shape_cast %29 : vector<128xf32> to vector<128x1xf32>
    %31 = arith.addf %28, %30 : vector<128x1xf32>
    %c0_22 = arith.constant 0 : index
    %c0_23 = arith.constant 0 : index
    %32 = vector.load %arg14[%c0_22, %c0_23] : memref<128x1xf32, #tpu.memory_space<vmem>>, vector<128x1xf32>
    tpu.vector_store %arg14[%c0_22, %c0_23], %31 {strides = array<i32>} : memref<128x1xf32, #tpu.memory_space<vmem>>, vector<128x1xf32>,
    %c0_24 = arith.constant 0 : index
    %c0_25 = arith.constant 0 : index
    %33 = vector.load %arg15[%c0_24, %c0_25] : memref<128x32xf32, #tpu.memory_space<vmem>>, vector<128x32xf32>
    %34 = vector.broadcast %23 : vector<128x1xf32> to vector<128x32xf32>
    %35 = arith.mulf %34, %33 : vector<128x32xf32>
    %cst_26 = arith.constant dense<0.000000e+00> : vector<128x32xf32>
    %36 = tpu.matmul %26, %15, %cst_26 {dimension_numbers = #tpu.dot_dimension_numbers<[1], [0], [0], [1], [0, 0, 1, 1], [], []>} : vector<128x128xf32>, vector<128x32xf32>, vector<128x32xf32> -> vector<128x32xf32>
    %37 = arith.addf %35, %36 : vector<128x32xf32>
    %c0_27 = arith.constant 0 : index
    %c0_28 = arith.constant 0 : index
    %38 = vector.load %arg15[%c0_27, %c0_28] : memref<128x32xf32, #tpu.memory_space<vmem>>, vector<128x32xf32>
    tpu.vector_store %arg15[%c0_27, %c0_28], %37 {strides = array<i32>} : memref<128x32xf32, #tpu.memory_space<vmem>>, vector<128x32xf32>,
    %c0_29 = arith.constant 0 : index
    %c0_30 = arith.constant 0 : index
    %39 = vector.load %arg13[%c0_29, %c0_30] : memref<128x1xf32, #tpu.memory_space<vmem>>, vector<128x1xf32>
    tpu.vector_store %arg13[%c0_29, %c0_30], %21 {strides = array<i32>} : memref<128x1xf32, #tpu.memory_space<vmem>>, vector<128x1xf32>,
    %c1_i32 = arith.constant 1 : i32
    %40 = arith.cmpi eq, %arg3, %c1_i32 : i32
    %41 = arith.extui %40 : i1 to i32
    %c0_i32_31 = arith.constant 0 : i32
    %42 = arith.cmpi ne, %41, %c0_i32_31 : i32
    scf.if %42 {
      %c0_32 = arith.constant 0 : index
      %c0_33 = arith.constant 0 : index
      %43 = vector.load %arg14[%c0_32, %c0_33] : memref<128x1xf32, #tpu.memory_space<vmem>>, vector<128x1xf32>
      %44 = tpu.reciprocal %43 {approx = true} : vector<128x1xf32> -> vector<128x1xf32>
      %c0_34 = arith.constant 0 : index
      %c0_35 = arith.constant 0 : index
      %45 = vector.load %arg15[%c0_34, %c0_35] : memref<128x32xf32, #tpu.memory_space<vmem>>, vector<128x32xf32>
      %46 = vector.broadcast %44 : vector<128x1xf32> to vector<128x32xf32>
      %47 = arith.mulf %45, %46 : vector<128x32xf32>
      %c0_36 = arith.constant 0 : index
      %c0_37 = arith.constant 0 : index
      %48 = vector.load %arg16[%c0_36, %c0_37] : memref<128x128xf32, #tpu.memory_space<vmem>>, vector<128x128xf32>
      %c0_38 = arith.constant 0 : index
      %c0_39 = arith.constant 0 : index
      %c0_40 = arith.constant 0 : index
      %49 = vector.load %arg9[%c0_38, %c0_39, %c0_40] : memref<1x32x128xf32, #tpu.memory_space<vmem>>, vector<1x32x128xf32>
      %50 = vector.shape_cast %49 : vector<1x32x128xf32> to vector<32x128xf32>
      %cst_41 = arith.constant dense<0.000000e+00> : vector<128x128xf32>
      %51 = tpu.matmul %47, %50, %cst_41 {dimension_numbers = #tpu.dot_dimension_numbers<[1], [0], [0], [1], [0, 0, 1, 1], [], []>} : vector<128x32xf32>, vector<32x128xf32>, vector<128x128xf32> -> vector<128x128xf32>
      %52 = arith.addf %48, %51 : vector<128x128xf32>
      %c0_42 = arith.constant 0 : index
      %c0_43 = arith.constant 0 : index
      %53 = vector.load %arg16[%c0_42, %c0_43] : memref<128x128xf32, #tpu.memory_space<vmem>>, vector<128x128xf32>
      tpu.vector_store %arg16[%c0_42, %c0_43], %52 {strides = array<i32>} : memref<128x128xf32, #tpu.memory_space<vmem>>, vector<128x128xf32>,
      %c3_i32 = arith.constant 3 : i32
      %54 = arith.cmpi eq, %arg2, %c3_i32 : i32
      %55 = arith.extui %54 : i1 to i32
      %c0_i32_44 = arith.constant 0 : i32
      %56 = arith.cmpi ne, %55, %c0_i32_44 : i32
      scf.if %56 {
        %c0_45 = arith.constant 0 : index
        %c0_46 = arith.constant 0 : index
        %57 = vector.load %arg16[%c0_45, %c0_46] : memref<128x128xf32, #tpu.memory_space<vmem>>, vector<128x128xf32>
        %c0_47 = arith.constant 0 : index
        %c0_48 = arith.constant 0 : index
        %58 = vector.load %arg10[%c0_47, %c0_48] : memref<1x128xf32, #tpu.memory_space<vmem>>, vector<1x128xf32>
        %59 = vector.broadcast %58 : vector<1x128xf32> to vector<128x128xf32>
        %60 = arith.addf %57, %59 : vector<128x128xf32>
        %c0_49 = arith.constant 0 : index
        %c0_50 = arith.constant 0 : index
        %c0_51 = arith.constant 0 : index
        %61 = vector.load %arg11[%c0_49, %c0_50, %c0_51] : memref<1x128x128xf32, #tpu.memory_space<vmem>>, vector<1x128x128xf32>
        %62 = vector.shape_cast %61 : vector<1x128x128xf32> to vector<128x128xf32>
        %63 = vector.shape_cast %60 : vector<128x128xf32> to vector<1x128x128xf32>
        tpu.vector_store %arg11[%c0_49, %c0_50, %c0_51], %63 {strides = array<i32>} : memref<1x128x128xf32, #tpu.memory_space<vmem>>, vector<1x128x128xf32>,
      } else {
      }
    } else {
    }
    return
  }
  func.func @transform_0(%arg0: i32, %arg1: i32, %arg2: i32, %arg3: i32) -> (i32, i32, i32) {
    %c0_i32 = arith.constant 0 : i32
    %c0_i32_0 = arith.constant 0 : i32
    return %arg0, %arg1, %c0_i32 : i32, i32, i32
  }
  func.func @transform_1(%arg0: i32, %arg1: i32, %arg2: i32, %arg3: i32) -> (i32, i32, i32) {
    %c0_i32 = arith.constant 0 : i32
    %c0_i32_0 = arith.constant 0 : i32
    return %arg0, %arg3, %c0_i32 : i32, i32, i32
  }
  func.func @transform_2(%arg0: i32, %arg1: i32, %arg2: i32, %arg3: i32) -> (i32, i32, i32) {
    %c0_i32 = arith.constant 0 : i32
    %c0_i32_0 = arith.constant 0 : i32
    %c0_i32_1 = arith.constant 0 : i32
    return %arg2, %c0_i32, %c0_i32_0 : i32, i32, i32
  }
  func.func @transform_3(%arg0: i32, %arg1: i32, %arg2: i32, %arg3: i32) -> (i32, i32, i32) {
    %c0_i32 = arith.constant 0 : i32
    %c0_i32_0 = arith.constant 0 : i32
    %c0_i32_1 = arith.constant 0 : i32
    return %arg2, %c0_i32, %c0_i32_0 : i32, i32, i32
  }
  func.func @transform_4(%arg0: i32, %arg1: i32, %arg2: i32, %arg3: i32) -> (i32, i32, i32) {
    %c0_i32 = arith.constant 0 : i32
    %c0_i32_0 = arith.constant 0 : i32
    %c0_i32_1 = arith.constant 0 : i32
    return %arg2, %c0_i32, %c0_i32_0 : i32, i32, i32
  }
  func.func @transform_5(%arg0: i32, %arg1: i32, %arg2: i32, %arg3: i32) -> (i32, i32, i32) {
    %c0_i32 = arith.constant 0 : i32
    %c0_i32_0 = arith.constant 0 : i32
    %c0_i32_1 = arith.constant 0 : i32
    return %arg2, %c0_i32, %c0_i32_0 : i32, i32, i32
  }
  func.func @transform_6(%arg0: i32, %arg1: i32, %arg2: i32, %arg3: i32) -> (i32, i32) {
    %c0_i32 = arith.constant 0 : i32
    %c0_i32_0 = arith.constant 0 : i32
    %c0_i32_1 = arith.constant 0 : i32
    return %c0_i32, %c0_i32_0 : i32, i32
  }
  func.func @transform_7(%arg0: i32, %arg1: i32, %arg2: i32, %arg3: i32) -> (i32, i32, i32) {
    %c0_i32 = arith.constant 0 : i32
    %c0_i32_0 = arith.constant 0 : i32
    return %arg0, %arg1, %c0_i32 : i32, i32, i32
  }
}

</mosaic_0001>

<llo_original>
// kernel: tpu_custom_call.1
$region0: #{tpu_custom_call.1}
  #allocation0 [shape = 'u32[]', space=smem, size = 0x4, offset = 0x4, fixed_abs, tag = 'smem constant byte address 0x4 - core index']
  #allocation1 [shape = 'u32[72,128]{1,0:T(1,128)}', space=vmem, size = 0x9000, scoped, tag = 'internal scratch']
  #allocation2 [shape = 'f32[128,32]{1,0:T(8,128)}', space=vmem, size = 0x10000, scoped, tag = 'scratch operand']
  #allocation3 [shape = 'f32[128,1]{1,0:T(8,128)}', space=vmem, size = 0x10000, scoped, tag = 'scratch operand']
  #allocation4 [shape = 'f32[128,1]{1,0:T(8,128)}', space=vmem, size = 0x10000, scoped, tag = 'scratch operand']
  #allocation5 [shape = 'f32[128,32]{1,0:T(8,128)}', space=vmem, size = 0x10000, scoped, tag = 'scratch operand']
  #allocation6 [shape = 'f32[128,128]{1,0:T(8,128)}', space=vmem, size = 0x10000, scoped, tag = 'scratch operand']
  %s0 = inlined_call_operand.vmem [shape: f32[2,256,128], index: 0, kind: input, shape index: {}]
  %s1 = inlined_call_operand.vmem [shape: f32[2,256,128], index: 1, kind: input, shape index: {}]
  %s2 = inlined_call_operand.vmem [shape: f32[4,128,32], index: 2, kind: input, shape index: {}]
  %s3 = inlined_call_operand.vmem [shape: f32[4,128,32], index: 3, kind: input, shape index: {}]
  %s4 = inlined_call_operand.vmem [shape: f32[4,128,32], index: 4, kind: input, shape index: {}]
  %s5 = inlined_call_operand.vmem [shape: f32[4,32,128], index: 5, kind: input, shape index: {}]
  %s6 = inlined_call_operand.vmem [shape: f32[1,128], index: 6, kind: input, shape index: {}]
  %s7 = inlined_call_operand.hbm [shape: f32[2,256,128], index: 7, kind: output, shape index: {}]
  %s8 = sld [smem:[#allocation0]]
  $region77: #{tpu_custom_call.1} parent=0
    _
  %s10 = ssub.s32 1, %s8
  %s11 = scalar_select 0, %s10, %s8
  $region1: #{tpu_custom_call.1} parent=0
    #allocation7 [shape = 'u8[131072]{0}', space=vmem, size = 0x20000, scoped, tag = 'output window, operand 0']
    #allocation8 [shape = 's32[2]{0}', space=sflag, size = 0x8, scoped, tag = 'scoped memory for tpu_custom_call.1']
    %12 = vsyncpa [#allocation8], 0
    %s13 = scalar_lea.sflag [#allocation8], 1
    %14 = vsyncpa %s13, 0
    loop: start=0, step=1, limit=34
    $region2: #{tpu_custom_call.1} parent=1 // loop_pre_header
      _
    $region3: #{tpu_custom_call.1} parent=1 // loop_header
      %s16 = sphi 0, %s20
      %p17 = scmp.ge.s32.totalorder %s16, 34
      %s23 = sphi 0, %s49
      %s24 = sphi 0, %s45
      %s25 = sphi 0, %s41
      %s26 = sphi 0, %s37
      %s27 = sphi 0, %s23
      %s28 = sphi 0, %s24
      %s29 = sphi 0, %s25
      %s30 = sphi 0, %s26
      %s31 = sphi 0, %s27
      %s32 = sphi 0, %s28
      %s33 = sphi 0, %s29
      %s34 = sphi 0, %s30
      %s54 = sphi 0, %s56
      %s57 = sphi 0, %s54
      %s58 = sphi 0, %s57
      %s74 = sphi 0, %s58
      %s82 = sphi 0, %s84
      %s85 = sphi 0, %s82
      %s86 = sphi 0, %s85
      %s102 = sphi 0, %s86
      %s108 = sphi 0, %s110
      %s111 = sphi 0, %s108
      %s112 = sphi 0, %s111
      %s128 = sphi 0, %s112
      %s134 = sphi 0, %s136
      %s137 = sphi 0, %s134
      %s138 = sphi 0, %s137
      %s154 = sphi 0, %s138
      %s160 = sphi 0, %s162
      %s163 = sphi 0, %s160
      %s164 = sphi 0, %s163
      %s180 = sphi 0, %s164
      %s186 = sphi 0, %s188
      %s189 = sphi 0, %s186
      %s190 = sphi 0, %s189
      %s206 = sphi 0, %s190
      %s210 = sphi 0, %s210
      %s212 = sphi 0, %s210
      %s213 = sphi 0, %s212
      %s227 = sphi 0, %s213
      %s235 = sphi 0, %s237
      %s238 = sphi 0, %s235
      %s239 = sphi 0, %s238
      %s255 = sphi 0, %s239
    $region4: #{tpu_custom_call.1} parent=1 // loop_header_branch
      %19 = sbr.rel (%p17) target = $region8
    $region5: #{tpu_custom_call.1} parent=1 // loop_body
      %s21 = ssub.s32 %s16, 1
      %s22 = ssub.s32 %s16, 2
      %s35 = sadd.s32 1, %s26
      %p36 = scmp.ge.s32.totalorder %s35, 2
      %s37 = scalar_select %p36, 0, %s35
      %s38 = sadd.s32 1, %s25
      %s39 = scalar_select %p36, %s38, %s25
      %p40 = scmp.ge.s32.totalorder %s39, 4
      %s41 = scalar_select %p40, 0, %s39
      %s42 = sadd.s32 1, %s24
      %s43 = scalar_select %p40, %s42, %s24
      %p44 = scmp.ge.s32.totalorder %s43, 2
      %s45 = scalar_select %p44, 0, %s43
      %s46 = sadd.s32 1, %s23
      %s47 = scalar_select %p44, %s46, %s23
      %p48 = scmp.ge.s32.totalorder %s47, 2
      %s49 = scalar_select %p48, 0, %s47
      %s50 = ssub.s32 %s23, %s49
      %s51 = ssub.s32 %s24, %s45
      %s52 = sor.u32 %s50, %s51
      %p53 = scmp.eq.s32.totalorder %s52, 0
      %s55 = sadd.s32 %s54, 1
      %s56 = scalar_select %p53, %s54, %s55
      %p59 = pneg %p53
      %p60 = scmp.eq.s32.totalorder %s16, 31
      %p61 = por %p59, %p60
      %p62 = scmp.ne.s32.totalorder %s54, %s57
      %p63 = scmp.eq.s32.totalorder %s16, 0
      %p64 = por %p62, %p63
      %p65 = scmp.ne.s32.totalorder %s54, %s57
      %p66 = scmp.eq.s32.totalorder %s21, 31
      %p67 = por %p65, %p66
      %p68 = scmp.ne.s32.totalorder %s57, %s58
      %p69 = scmp.eq.s32.totalorder %s21, 0
      %p70 = por %p68, %p69
      %p71 = scmp.ne.s32.totalorder %s57, %s58
      %p72 = scmp.eq.s32.totalorder %s22, 31
      %p73 = por %p71, %p72
      %p75 = scmp.ne.s32.totalorder %s58, %s74
      %p76 = scmp.eq.s32.totalorder %s22, 0
      %p77 = por %p75, %p76
      %s78 = ssub.s32 %s23, %s49
      %s79 = ssub.s32 %s26, %s37
      %s80 = sor.u32 %s78, %s79
      %p81 = scmp.eq.s32.totalorder %s80, 0
      %s83 = sadd.s32 %s82, 1
      %s84 = scalar_select %p81, %s82, %s83
      %p87 = pneg %p81
      %p88 = scmp.eq.s32.totalorder %s16, 31
      %p89 = por %p87, %p88
      %p90 = scmp.ne.s32.totalorder %s82, %s85
      %p91 = scmp.eq.s32.totalorder %s16, 0
      %p92 = por %p90, %p91
      %p93 = scmp.ne.s32.totalorder %s82, %s85
      %p94 = scmp.eq.s32.totalorder %s21, 31
      %p95 = por %p93, %p94
      %p96 = scmp.ne.s32.totalorder %s85, %s86
      %p97 = scmp.eq.s32.totalorder %s21, 0
      %p98 = por %p96, %p97
      %p99 = scmp.ne.s32.totalorder %s85, %s86
      %p100 = scmp.eq.s32.totalorder %s22, 31
      %p101 = por %p99, %p100
      %p103 = scmp.ne.s32.totalorder %s86, %s102
      %p104 = scmp.eq.s32.totalorder %s22, 0
      %p105 = por %p103, %p104
      %s106 = ssub.s32 %s25, %s41
      %p107 = scmp.eq.s32.totalorder %s106, 0
      %s109 = sadd.s32 %s108, 1
      %s110 = scalar_select %p107, %s108, %s109
      %p113 = pneg %p107
      %p114 = scmp.eq.s32.totalorder %s16, 31
      %p115 = por %p113, %p114
      %p116 = scmp.ne.s32.totalorder %s108, %s111
      %p117 = scmp.eq.s32.totalorder %s16, 0
      %p118 = por %p116, %p117
      %p119 = scmp.ne.s32.totalorder %s108, %s111
      %p120 = scmp.eq.s32.totalorder %s21, 31
      %p121 = por %p119, %p120
      %p122 = scmp.ne.s32.totalorder %s111, %s112
      %p123 = scmp.eq.s32.totalorder %s21, 0
      %p124 = por %p122, %p123
      %p125 = scmp.ne.s32.totalorder %s111, %s112
      %p126 = scmp.eq.s32.totalorder %s22, 31
      %p127 = por %p125, %p126
      %p129 = scmp.ne.s32.totalorder %s112, %s128
      %p130 = scmp.eq.s32.totalorder %s22, 0
      %p131 = por %p129, %p130
      %s132 = ssub.s32 %s25, %s41
      %p133 = scmp.eq.s32.totalorder %s132, 0
      %s135 = sadd.s32 %s134, 1
      %s136 = scalar_select %p133, %s134, %s135
      %p139 = pneg %p133
      %p140 = scmp.eq.s32.totalorder %s16, 31
      %p141 = por %p139, %p140
      %p142 = scmp.ne.s32.totalorder %s134, %s137
      %p143 = scmp.eq.s32.totalorder %s16, 0
      %p144 = por %p142, %p143
      %p145 = scmp.ne.s32.totalorder %s134, %s137
      %p146 = scmp.eq.s32.totalorder %s21, 31
      %p147 = por %p145, %p146
      %p148 = scmp.ne.s32.totalorder %s137, %s138
      %p149 = scmp.eq.s32.totalorder %s21, 0
      %p150 = por %p148, %p149
      %p151 = scmp.ne.s32.totalorder %s137, %s138
      %p152 = scmp.eq.s32.totalorder %s22, 31
      %p153 = por %p151, %p152
      %p155 = scmp.ne.s32.totalorder %s138, %s154
      %p156 = scmp.eq.s32.totalorder %s22, 0
      %p157 = por %p155, %p156
      %s158 = ssub.s32 %s25, %s41
      %p159 = scmp.eq.s32.totalorder %s158, 0
      %s161 = sadd.s32 %s160, 1
      %s162 = scalar_select %p159, %s160, %s161
      %p165 = pneg %p159
      %p166 = scmp.eq.s32.totalorder %s16, 31
      %p167 = por %p165, %p166
      %p168 = scmp.ne.s32.totalorder %s160, %s163
      %p169 = scmp.eq.s32.totalorder %s16, 0
      %p170 = por %p168, %p169
      %p171 = scmp.ne.s32.totalorder %s160, %s163
      %p172 = scmp.eq.s32.totalorder %s21, 31
      %p173 = por %p171, %p172
      %p174 = scmp.ne.s32.totalorder %s163, %s164
      %p175 = scmp.eq.s32.totalorder %s21, 0
      %p176 = por %p174, %p175
      %p177 = scmp.ne.s32.totalorder %s163, %s164
      %p178 = scmp.eq.s32.totalorder %s22, 31
      %p179 = por %p177, %p178
      %p181 = scmp.ne.s32.totalorder %s164, %s180
      %p182 = scmp.eq.s32.totalorder %s22, 0
      %p183 = por %p181, %p182
      %s184 = ssub.s32 %s25, %s41
      %p185 = scmp.eq.s32.totalorder %s184, 0
      %s187 = sadd.s32 %s186, 1
      %s188 = scalar_select %p185, %s186, %s187
      %p191 = pneg %p185
      %p192 = scmp.eq.s32.totalorder %s16, 31
      %p193 = por %p191, %p192
      %p194 = scmp.ne.s32.totalorder %s186, %s189
      %p195 = scmp.eq.s32.totalorder %s16, 0
      %p196 = por %p194, %p195
      %p197 = scmp.ne.s32.totalorder %s186, %s189
      %p198 = scmp.eq.s32.totalorder %s21, 31
      %p199 = por %p197, %p198
      %p200 = scmp.ne.s32.totalorder %s189, %s190
      %p201 = scmp.eq.s32.totalorder %s21, 0
      %p202 = por %p200, %p201
      %p203 = scmp.ne.s32.totalorder %s189, %s190
      %p204 = scmp.eq.s32.totalorder %s22, 31
      %p205 = por %p203, %p204
      %p207 = scmp.ne.s32.totalorder %s190, %s206
      %p208 = scmp.eq.s32.totalorder %s22, 0
      %p209 = por %p207, %p208
      %s211 = sadd.s32 %s210, 1
      %p214 = scmp.eq.s32.totalorder %s16, 31
      %p215 = scmp.ne.s32.totalorder %s210, %s212
      %p216 = scmp.eq.s32.totalorder %s16, 0
      %p217 = por %p215, %p216
      %p218 = scmp.ne.s32.totalorder %s210, %s212
      %p219 = scmp.eq.s32.totalorder %s21, 31
      %p220 = por %p218, %p219
      %p221 = scmp.ne.s32.totalorder %s212, %s213
      %p222 = scmp.eq.s32.totalorder %s21, 0
      %p223 = por %p221, %p222
      %p224 = scmp.ne.s32.totalorder %s212, %s213
      %p225 = scmp.eq.s32.totalorder %s22, 31
      %p226 = por %p224, %p225
      %p228 = scmp.ne.s32.totalorder %s213, %s227
      %p229 = scmp.eq.s32.totalorder %s22, 0
      %p230 = por %p228, %p229
      %s231 = ssub.s32 %s23, %s49
      %s232 = ssub.s32 %s24, %s45
      %s233 = sor.u32 %s231, %s232
      %p234 = scmp.eq.s32.totalorder %s233, 0
      %s236 = sadd.s32 %s235, 1
      %s237 = scalar_select %p234, %s235, %s236
      %p240 = pneg %p234
      %p241 = scmp.eq.s32.totalorder %s16, 31
      %p242 = por %p240, %p241
      %p243 = scmp.ne.s32.totalorder %s235, %s238
      %p244 = scmp.eq.s32.totalorder %s16, 0
      %p245 = por %p243, %p244
      %p246 = scmp.ne.s32.totalorder %s235, %s238
      %p247 = scmp.eq.s32.totalorder %s21, 31
      %p248 = por %p246, %p247
      %p249 = scmp.ne.s32.totalorder %s238, %s239
      %p250 = scmp.eq.s32.totalorder %s21, 0
      %p251 = por %p249, %p250
      %p252 = scmp.ne.s32.totalorder %s238, %s239
      %p253 = scmp.eq.s32.totalorder %s22, 31
      %p254 = por %p252, %p253
      %p256 = scmp.ne.s32.totalorder %s239, %s255
      %p257 = scmp.eq.s32.totalorder %s22, 0
      %p258 = por %p256, %p257
      %p259 = scmp.le.s32.totalorder 1, %s16
      %p260 = scmp.lt.s32.totalorder %s16, 33
      %p261 = pnand %p259, %p260
      %p262 = pneg %p261
      // Predicated region
      $region9: #{tpu_custom_call.1} parent=5 // pred_check
        _
      $region10: #{tpu_custom_call.1} parent=5 // pred_check_branch
        %264 = sbr.rel (%p261) target = $region12
      $region11: #{tpu_custom_call.1} parent=5 // pred_region
        %s265 = ssub.s32 %s16, 1
        // Predicated region
        $region13: #{tpu_custom_call.1} parent=11 // pred_check
          %p266 = pneg %p223
        $region14: #{tpu_custom_call.1} parent=11 // pred_check_branch
          %268 = sbr.rel (%p266) target = $region16
        $region15: #{tpu_custom_call.1} parent=11 // pred_region
          _
        $region16: #{tpu_custom_call.1} parent=11 // pred_fallthru
          _
      $region12: #{tpu_custom_call.1} parent=5 // pred_fallthru
        _
      %p269 = scmp.lt.s32.totalorder %s16, 32
      // Predicated region
      $region17: #{tpu_custom_call.1} parent=5 // pred_check
        %p270 = pneg %p269
      $region18: #{tpu_custom_call.1} parent=5 // pred_check_branch
        %272 = sbr.rel (%p270) target = $region20
      $region19: #{tpu_custom_call.1} parent=5 // pred_region
        // Predicated region
        $region21: #{tpu_custom_call.1} parent=19 // pred_check
          %p273 = pneg %p64
        $region22: #{tpu_custom_call.1} parent=19 // pred_check_branch
          %275 = sbr.rel (%p273) target = $region24
        $region23: #{tpu_custom_call.1} parent=19 // pred_region
          %s276 = smul.u32 16, %s24
          %p277 = scmp.lt.s32.totalorder %s23, 1
          %s278 = scalar_select %p277, %s23, 1
          %p279 = scmp.lt.s32.totalorder %s276, 31
          %s280 = scalar_select %p279, %s276, 31
          %s281 = smul.addr %s278, 32
          %s282 = sadd.s32 %s280, %s281
          %s283 = smul.addr %s282, 8
          %s284 = scalar_lea.vmem %s0, %s283
          %s285 = smul.u32 16, %s24
        $region24: #{tpu_custom_call.1} parent=19 // pred_fallthru
          _
        // Predicated region
        $region25: #{tpu_custom_call.1} parent=19 // pred_check
          %p286 = pneg %p92
        $region26: #{tpu_custom_call.1} parent=19 // pred_check_branch
          %288 = sbr.rel (%p286) target = $region28
        $region27: #{tpu_custom_call.1} parent=19 // pred_region
          %s289 = smul.u32 16, %s26
          %p290 = scmp.lt.s32.totalorder %s23, 1
          %s291 = scalar_select %p290, %s23, 1
          %p292 = scmp.lt.s32.totalorder %s289, 31
          %s293 = scalar_select %p292, %s289, 31
          %s294 = smul.addr %s291, 32
          %s295 = sadd.s32 %s293, %s294
          %s296 = smul.addr %s295, 8
          %s297 = scalar_lea.vmem %s1, %s296
          %s298 = smul.u32 16, %s26
        $region28: #{tpu_custom_call.1} parent=19 // pred_fallthru
          _
        // Predicated region
        $region29: #{tpu_custom_call.1} parent=19 // pred_check
          %p299 = pneg %p118
        $region30: #{tpu_custom_call.1} parent=19 // pred_check_branch
          %301 = sbr.rel (%p299) target = $region32
        $region31: #{tpu_custom_call.1} parent=19 // pred_region
          %p302 = scmp.lt.s32.totalorder %s25, 3
          %s303 = scalar_select %p302, %s25, 3
          %s304 = smul.addr %s303, 16
          %s305 = smul.addr %s304, 8
          %s306 = scalar_lea.vmem %s2, %s305
        $region32: #{tpu_custom_call.1} parent=19 // pred_fallthru
          _
        // Predicated region
        $region33: #{tpu_custom_call.1} parent=19 // pred_check
          %p307 = pneg %p144
        $region34: #{tpu_custom_call.1} parent=19 // pred_check_branch
          %309 = sbr.rel (%p307) target = $region36
        $region35: #{tpu_custom_call.1} parent=19 // pred_region
          %p310 = scmp.lt.s32.totalorder %s25, 3
          %s311 = scalar_select %p310, %s25, 3
          %s312 = smul.addr %s311, 16
          %s313 = smul.addr %s312, 8
          %s314 = scalar_lea.vmem %s3, %s313
        $region36: #{tpu_custom_call.1} parent=19 // pred_fallthru
          _
        // Predicated region
        $region37: #{tpu_custom_call.1} parent=19 // pred_check
          %p315 = pneg %p170
        $region38: #{tpu_custom_call.1} parent=19 // pred_check_branch
          %317 = sbr.rel (%p315) target = $region40
        $region39: #{tpu_custom_call.1} parent=19 // pred_region
          %p318 = scmp.lt.s32.totalorder %s25, 3
          %s319 = scalar_select %p318, %s25, 3
          %s320 = smul.addr %s319, 16
          %s321 = smul.addr %s320, 8
          %s322 = scalar_lea.vmem %s4, %s321
        $region40: #{tpu_custom_call.1} parent=19 // pred_fallthru
          _
        // Predicated region
        $region41: #{tpu_custom_call.1} parent=19 // pred_check
          %p323 = pneg %p196
        $region42: #{tpu_custom_call.1} parent=19 // pred_check_branch
          %325 = sbr.rel (%p323) target = $region44
        $region43: #{tpu_custom_call.1} parent=19 // pred_region
          %p326 = scmp.lt.s32.totalorder %s25, 3
          %s327 = scalar_select %p326, %s25, 3
          %s328 = smul.addr %s327, 4
          %s329 = smul.addr %s328, 8
          %s330 = scalar_lea.vmem %s5, %s329
        $region44: #{tpu_custom_call.1} parent=19 // pred_fallthru
          _
      $region20: #{tpu_custom_call.1} parent=5 // pred_fallthru
        _
      %p331 = scmp.le.s32.totalorder 1, %s16
      %p332 = scmp.lt.s32.totalorder %s16, 33
      %p333 = pnand %p331, %p332
      %p334 = pneg %p333
      // Predicated region
      $region45: #{tpu_custom_call.1} parent=5 // pred_check
        _
      $region46: #{tpu_custom_call.1} parent=5 // pred_check_branch
        %336 = sbr.rel (%p333) target = $region48
      $region47: #{tpu_custom_call.1} parent=5 // pred_region
        %s337 = ssub.s32 %s16, 1
        %s338 = smul.u32 16, %s28
        %p339 = scmp.lt.s32.totalorder %s27, 1
        %s340 = scalar_select %p339, %s27, 1
        %p341 = scmp.lt.s32.totalorder %s338, 31
        %s342 = scalar_select %p341, %s338, 31
        %s343 = smul.addr %s340, 32
        %s344 = sadd.s32 %s342, %s343
        %s345 = smul.addr %s344, 8
        %s346 = scalar_lea.vmem %s0, %s345
        %p347 = pneg %p70
        %p348 = pneg %p67
        %s349 = smul.u32 16, %s30
        %p350 = scmp.lt.s32.totalorder %s27, 1
        %s351 = scalar_select %p350, %s27, 1
        %p352 = scmp.lt.s32.totalorder %s349, 31
        %s353 = scalar_select %p352, %s349, 31
        %s354 = smul.addr %s351, 32
        %s355 = sadd.s32 %s353, %s354
        %s356 = smul.addr %s355, 8
        %s357 = scalar_lea.vmem %s1, %s356
        %p358 = pneg %p98
        %p359 = pneg %p95
        %p360 = scmp.lt.s32.totalorder %s29, 3
        %s361 = scalar_select %p360, %s29, 3
        %s362 = smul.addr %s361, 16
        %s363 = smul.addr %s362, 8
        %s364 = scalar_lea.vmem %s2, %s363
        %p365 = pneg %p124
        %p366 = pneg %p121
        %p367 = scmp.lt.s32.totalorder %s29, 3
        %s368 = scalar_select %p367, %s29, 3
        %s369 = smul.addr %s368, 16
        %s370 = smul.addr %s369, 8
        %s371 = scalar_lea.vmem %s3, %s370
        %p372 = pneg %p150
        %p373 = pneg %p147
        %p374 = scmp.lt.s32.totalorder %s29, 3
        %s375 = scalar_select %p374, %s29, 3
        %s376 = smul.addr %s375, 16
        %s377 = smul.addr %s376, 8
        %s378 = scalar_lea.vmem %s4, %s377
        %p379 = pneg %p176
        %p380 = pneg %p173
        %p381 = scmp.lt.s32.totalorder %s29, 3
        %s382 = scalar_select %p381, %s29, 3
        %s383 = smul.addr %s382, 4
        %s384 = smul.addr %s383, 8
        %s385 = scalar_lea.vmem %s5, %s384
        %p386 = pneg %p202
        %p387 = pneg %p199
        %p388 = pneg %p223
        %p389 = pneg %p220
        %p390 = pneg %p251
        %p391 = pneg %p248
        %s392 = sand.u32 %s238, 1
        %s393 = scalar_lea.sflag [#allocation8], %s392
        %s394 = sand.u32 %s238, 1
        %s395 = smul.addr %s394, 128
        %s396 = scalar_lea.vmem [#allocation7], %s395
        %s397 = smul.u32 16, %s28
        %p398 = scmp.lt.s32.totalorder %s27, 1
        %s399 = scalar_select %p398, %s27, 1
        %p400 = scmp.lt.s32.totalorder %s397, 31
        %s401 = scalar_select %p400, %s397, 31
        %s402 = smul.addr %s399, 32
        %s403 = sadd.s32 %s401, %s402
        %s404 = smul.addr %s403, 8
        %s405 = scalar_lea.vmem %s0, %s404
        %s406 = smul.u32 16, %s28
        %s407 = smul.u32 16, %s30
        %p408 = scmp.lt.s32.totalorder %s27, 1
        %s409 = scalar_select %p408, %s27, 1
        %p410 = scmp.lt.s32.totalorder %s407, 31
        %s411 = scalar_select %p410, %s407, 31
        %s412 = smul.addr %s409, 32
        %s413 = sadd.s32 %s411, %s412
        %s414 = smul.addr %s413, 8
        %s415 = scalar_lea.vmem %s1, %s414
        %s416 = smul.u32 16, %s30
        %p417 = scmp.lt.s32.totalorder %s29, 3
        %s418 = scalar_select %p417, %s29, 3
        %s419 = smul.addr %s418, 16
        %s420 = smul.addr %s419, 8
        %s421 = scalar_lea.vmem %s2, %s420
        %p422 = scmp.lt.s32.totalorder %s29, 3
        %s423 = scalar_select %p422, %s29, 3
        %s424 = smul.addr %s423, 16
        %s425 = smul.addr %s424, 8
        %s426 = scalar_lea.vmem %s3, %s425
        %p427 = scmp.lt.s32.totalorder %s29, 3
        %s428 = scalar_select %p427, %s29, 3
        %s429 = smul.addr %s428, 16
        %s430 = smul.addr %s429, 8
        %s431 = scalar_lea.vmem %s4, %s430
        %p432 = scmp.lt.s32.totalorder %s29, 3
        %s433 = scalar_select %p432, %s29, 3
        %s434 = smul.addr %s433, 4
        %s435 = smul.addr %s434, 8
        %s436 = scalar_lea.vmem %s5, %s435
        %s437 = smul.u32 16, %s28
        %p438 = scmp.eq.s32.totalorder %s29, 0
        %p439 = scmp.eq.s32.totalorder %s30, 0
        %p440 = pnand %p438, %p439
        %p441 = pneg %p440
        // Predicated region
        $region49: #{tpu_custom_call.1} parent=47 // pred_check
          _
        $region50: #{tpu_custom_call.1} parent=47 // pred_check_branch
          %443 = sbr.rel (%p440) target = $region52
        $region51: #{tpu_custom_call.1} parent=47 // pred_region
          %444 = vst [vmem:[#allocation6] sm:$0xff] 0.0
          %445 = vst [vmem:[#allocation6 + $0x8] sm:$0xff] 0.0
          %446 = vst [vmem:[#allocation6 + $0x10] sm:$0xff] 0.0
          %447 = vst [vmem:[#allocation6 + $0x18] sm:$0xff] 0.0
          %448 = vst [vmem:[#allocation6 + $0x20] sm:$0xff] 0.0
          %449 = vst [vmem:[#allocation6 + $0x28] sm:$0xff] 0.0
          %450 = vst [vmem:[#allocation6 + $0x30] sm:$0xff] 0.0
          %451 = vst [vmem:[#allocation6 + $0x38] sm:$0xff] 0.0
          %452 = vst [vmem:[#allocation6 + $0x40] sm:$0xff] 0.0
          %453 = vst [vmem:[#allocation6 + $0x48] sm:$0xff] 0.0
          %454 = vst [vmem:[#allocation6 + $0x50] sm:$0xff] 0.0
          %455 = vst [vmem:[#allocation6 + $0x58] sm:$0xff] 0.0
          %456 = vst [vmem:[#allocation6 + $0x60] sm:$0xff] 0.0
          %457 = vst [vmem:[#allocation6 + $0x68] sm:$0xff] 0.0
          %458 = vst [vmem:[#allocation6 + $0x70] sm:$0xff] 0.0
          %459 = vst [vmem:[#allocation6 + $0x78] sm:$0xff] 0.0
        $region52: #{tpu_custom_call.1} parent=47 // pred_fallthru
          _
        // Predicated region
        $region53: #{tpu_custom_call.1} parent=47 // pred_check
          %p460 = pneg %p439
        $region54: #{tpu_custom_call.1} parent=47 // pred_check_branch
          %462 = sbr.rel (%p460) target = $region56
        $region55: #{tpu_custom_call.1} parent=47 // pred_region
          %v463 = vld [vmem:[%s405] sm:$0xff]
          %v464 = vld [vmem:[%s405 + $0x8] sm:$0xff]
          %v465 = vld [vmem:[%s405 + $0x10] sm:$0xff]
          %v466 = vld [vmem:[%s405 + $0x18] sm:$0xff]
          %v467 = vld [vmem:[%s405 + $0x20] sm:$0xff]
          %v468 = vld [vmem:[%s405 + $0x28] sm:$0xff]
          %v469 = vld [vmem:[%s405 + $0x30] sm:$0xff]
          %v470 = vld [vmem:[%s405 + $0x38] sm:$0xff]
          %v471 = vld [vmem:[%s405 + $0x40] sm:$0xff]
          %v472 = vld [vmem:[%s405 + $0x48] sm:$0xff]
          %v473 = vld [vmem:[%s405 + $0x50] sm:$0xff]
          %v474 = vld [vmem:[%s405 + $0x58] sm:$0xff]
          %v475 = vld [vmem:[%s405 + $0x60] sm:$0xff]
          %v476 = vld [vmem:[%s405 + $0x68] sm:$0xff]
          %v477 = vld [vmem:[%s405 + $0x70] sm:$0xff]
          %v478 = vld [vmem:[%s405 + $0x78] sm:$0xff]
          %v479 = vld [vmem:[%s421] sm:$0xff]
          %v480 = vld [vmem:[%s421 + $0x8] sm:$0xff]
          %v481 = vld [vmem:[%s421 + $0x10] sm:$0xff]
          %v482 = vld [vmem:[%s421 + $0x18] sm:$0xff]
          %v483 = vld [vmem:[%s421 + $0x20] sm:$0xff]
          %v484 = vld [vmem:[%s421 + $0x28] sm:$0xff]
          %v485 = vld [vmem:[%s421 + $0x30] sm:$0xff]
          %v486 = vld [vmem:[%s421 + $0x38] sm:$0xff]
          %v487 = vld [vmem:[%s421 + $0x40] sm:$0xff]
          %v488 = vld [vmem:[%s421 + $0x48] sm:$0xff]
          %v489 = vld [vmem:[%s421 + $0x50] sm:$0xff]
          %v490 = vld [vmem:[%s421 + $0x58] sm:$0xff]
          %v491 = vld [vmem:[%s421 + $0x60] sm:$0xff]
          %v492 = vld [vmem:[%s421 + $0x68] sm:$0xff]
          %v493 = vld [vmem:[%s421 + $0x70] sm:$0xff]
          %v494 = vld [vmem:[%s421 + $0x78] sm:$0xff]
          %495 = vmatpush.msra.mxu0 %v494
          %496 = vmatpush.msra.mxu0 %v493
          %497 = vmatpush.msra.mxu0 %v492
          %498 = vmatpush.msra.mxu0 %v491
          %499 = vmatpush.msra.mxu0 %v490
          %500 = vmatpush.msra.mxu0 %v489
          %501 = vmatpush.msra.mxu0 %v488
          %502 = vmatpush.msra.mxu0 %v487
          %503 = vmatpush.msra.mxu0 %v486
          %504 = vmatpush.msra.mxu0 %v485
          %505 = vmatpush.msra.mxu0 %v484
          %506 = vmatpush.msra.mxu0 %v483
          %507 = vmatpush.msra.mxu0 %v482
          %508 = vmatpush.msra.mxu0 %v481
          %509 = vmatpush.msra.mxu0 %v480
          %510 = vmatpush.msra.mxu0 %v479
          %511 = vmatmul.f32.gmra.mxu0 %v463
          %v512 = vpop.f32.mrf.mxu0
          %v513 = vadd.f32 0.0, %v512
          %514 = vmatmul.f32.gmra.mxu0 %v464
          %v515 = vpop.f32.mrf.mxu0
          %v516 = vadd.f32 0.0, %v515
          %517 = vmatmul.f32.gmra.mxu0 %v465
          %v518 = vpop.f32.mrf.mxu0
          %v519 = vadd.f32 0.0, %v518
          %520 = vmatmul.f32.gmra.mxu0 %v466
          %v521 = vpop.f32.mrf.mxu0
          %v522 = vadd.f32 0.0, %v521
          %523 = vmatmul.f32.gmra.mxu0 %v467
          %v524 = vpop.f32.mrf.mxu0
          %v525 = vadd.f32 0.0, %v524
          %526 = vmatmul.f32.gmra.mxu0 %v468
          %v527 = vpop.f32.mrf.mxu0
          %v528 = vadd.f32 0.0, %v527
          %529 = vmatmul.f32.gmra.mxu0 %v469
          %v530 = vpop.f32.mrf.mxu0
          %v531 = vadd.f32 0.0, %v530
          %532 = vmatmul.f32.gmra.mxu0 %v470
          %v533 = vpop.f32.mrf.mxu0
          %v534 = vadd.f32 0.0, %v533
          %535 = vmatmul.f32.gmra.mxu0 %v471
          %v536 = vpop.f32.mrf.mxu0
          %v537 = vadd.f32 0.0, %v536
          %538 = vmatmul.f32.gmra.mxu0 %v472
          %v539 = vpop.f32.mrf.mxu0
          %v540 = vadd.f32 0.0, %v539
          %541 = vmatmul.f32.gmra.mxu0 %v473
          %v542 = vpop.f32.mrf.mxu0
          %v543 = vadd.f32 0.0, %v542
          %544 = vmatmul.f32.gmra.mxu0 %v474
          %v545 = vpop.f32.mrf.mxu0
          %v546 = vadd.f32 0.0, %v545
          %547 = vmatmul.f32.gmra.mxu0 %v475
          %v548 = vpop.f32.mrf.mxu0
          %v549 = vadd.f32 0.0, %v548
          %550 = vmatmul.f32.gmra.mxu0 %v476
          %v551 = vpop.f32.mrf.mxu0
          %v552 = vadd.f32 0.0, %v551
          %553 = vmatmul.f32.gmra.mxu0 %v477
          %v554 = vpop.f32.mrf.mxu0
          %v555 = vadd.f32 0.0, %v554
          %556 = vmatmul.f32.gmra.mxu0 %v478
          %v557 = vpop.f32.mrf.mxu0
          %v558 = vadd.f32 0.0, %v557
          %559 = vdwg.mxu0
          %vm560 = vcmask 261120
          %561 = vst.msk [vmem:[#allocation2] sm:$0xff] %vm560, %v513
          %562 = vst.msk [vmem:[#allocation2 + $0x8] sm:$0xff] %vm560, %v516
          %563 = vst.msk [vmem:[#allocation2 + $0x10] sm:$0xff] %vm560, %v519
          %564 = vst.msk [vmem:[#allocation2 + $0x18] sm:$0xff] %vm560, %v522
          %565 = vst.msk [vmem:[#allocation2 + $0x20] sm:$0xff] %vm560, %v525
          %566 = vst.msk [vmem:[#allocation2 + $0x28] sm:$0xff] %vm560, %v528
          %567 = vst.msk [vmem:[#allocation2 + $0x30] sm:$0xff] %vm560, %v531
          %568 = vst.msk [vmem:[#allocation2 + $0x38] sm:$0xff] %vm560, %v534
          %569 = vst.msk [vmem:[#allocation2 + $0x40] sm:$0xff] %vm560, %v537
          %570 = vst.msk [vmem:[#allocation2 + $0x48] sm:$0xff] %vm560, %v540
          %571 = vst.msk [vmem:[#allocation2 + $0x50] sm:$0xff] %vm560, %v543
          %572 = vst.msk [vmem:[#allocation2 + $0x58] sm:$0xff] %vm560, %v546
          %573 = vst.msk [vmem:[#allocation2 + $0x60] sm:$0xff] %vm560, %v549
          %574 = vst.msk [vmem:[#allocation2 + $0x68] sm:$0xff] %vm560, %v552
          %575 = vst.msk [vmem:[#allocation2 + $0x70] sm:$0xff] %vm560, %v555
          %576 = vst.msk [vmem:[#allocation2 + $0x78] sm:$0xff] %vm560, %v558
          %vm577 = vcmask 7168
          %578 = vst.msk [vmem:[#allocation3] sm:$0xff] %vm577, -inf
          %579 = vst.msk [vmem:[#allocation3 + $0x8] sm:$0xff] %vm577, -inf
          %580 = vst.msk [vmem:[#allocation3 + $0x10] sm:$0xff] %vm577, -inf
          %581 = vst.msk [vmem:[#allocation3 + $0x18] sm:$0xff] %vm577, -inf
          %582 = vst.msk [vmem:[#allocation3 + $0x20] sm:$0xff] %vm577, -inf
          %583 = vst.msk [vmem:[#allocation3 + $0x28] sm:$0xff] %vm577, -inf
          %584 = vst.msk [vmem:[#allocation3 + $0x30] sm:$0xff] %vm577, -inf
          %585 = vst.msk [vmem:[#allocation3 + $0x38] sm:$0xff] %vm577, -inf
          %586 = vst.msk [vmem:[#allocation3 + $0x40] sm:$0xff] %vm577, -inf
          %587 = vst.msk [vmem:[#allocation3 + $0x48] sm:$0xff] %vm577, -inf
          %588 = vst.msk [vmem:[#allocation3 + $0x50] sm:$0xff] %vm577, -inf
          %589 = vst.msk [vmem:[#allocation3 + $0x58] sm:$0xff] %vm577, -inf
          %590 = vst.msk [vmem:[#allocation3 + $0x60] sm:$0xff] %vm577, -inf
          %591 = vst.msk [vmem:[#allocation3 + $0x68] sm:$0xff] %vm577, -inf
          %592 = vst.msk [vmem:[#allocation3 + $0x70] sm:$0xff] %vm577, -inf
          %593 = vst.msk [vmem:[#allocation3 + $0x78] sm:$0xff] %vm577, -inf
          %594 = vst.msk [vmem:[#allocation4] sm:$0xff] %vm577, 0.0
          %595 = vst.msk [vmem:[#allocation4 + $0x8] sm:$0xff] %vm577, 0.0
          %596 = vst.msk [vmem:[#allocation4 + $0x10] sm:$0xff] %vm577, 0.0
          %597 = vst.msk [vmem:[#allocation4 + $0x18] sm:$0xff] %vm577, 0.0
          %598 = vst.msk [vmem:[#allocation4 + $0x20] sm:$0xff] %vm577, 0.0
          %599 = vst.msk [vmem:[#allocation4 + $0x28] sm:$0xff] %vm577, 0.0
          %600 = vst.msk [vmem:[#allocation4 + $0x30] sm:$0xff] %vm577, 0.0
          %601 = vst.msk [vmem:[#allocation4 + $0x38] sm:$0xff] %vm577, 0.0
          %602 = vst.msk [vmem:[#allocation4 + $0x40] sm:$0xff] %vm577, 0.0
          %603 = vst.msk [vmem:[#allocation4 + $0x48] sm:$0xff] %vm577, 0.0
          %604 = vst.msk [vmem:[#allocation4 + $0x50] sm:$0xff] %vm577, 0.0
          %605 = vst.msk [vmem:[#allocation4 + $0x58] sm:$0xff] %vm577, 0.0
          %606 = vst.msk [vmem:[#allocation4 + $0x60] sm:$0xff] %vm577, 0.0
          %607 = vst.msk [vmem:[#allocation4 + $0x68] sm:$0xff] %vm577, 0.0
          %608 = vst.msk [vmem:[#allocation4 + $0x70] sm:$0xff] %vm577, 0.0
          %609 = vst.msk [vmem:[#allocation4 + $0x78] sm:$0xff] %vm577, 0.0
          %610 = vst.msk [vmem:[#allocation5] sm:$0xff] %vm560, 0.0
          %611 = vst.msk [vmem:[#allocation5 + $0x8] sm:$0xff] %vm560, 0.0
          %612 = vst.msk [vmem:[#allocation5 + $0x10] sm:$0xff] %vm560, 0.0
          %613 = vst.msk [vmem:[#allocation5 + $0x18] sm:$0xff] %vm560, 0.0
          %614 = vst.msk [vmem:[#allocation5 + $0x20] sm:$0xff] %vm560, 0.0
          %615 = vst.msk [vmem:[#allocation5 + $0x28] sm:$0xff] %vm560, 0.0
          %616 = vst.msk [vmem:[#allocation5 + $0x30] sm:$0xff] %vm560, 0.0
          %617 = vst.msk [vmem:[#allocation5 + $0x38] sm:$0xff] %vm560, 0.0
          %618 = vst.msk [vmem:[#allocation5 + $0x40] sm:$0xff] %vm560, 0.0
          %619 = vst.msk [vmem:[#allocation5 + $0x48] sm:$0xff] %vm560, 0.0
          %620 = vst.msk [vmem:[#allocation5 + $0x50] sm:$0xff] %vm560, 0.0
          %621 = vst.msk [vmem:[#allocation5 + $0x58] sm:$0xff] %vm560, 0.0
          %622 = vst.msk [vmem:[#allocation5 + $0x60] sm:$0xff] %vm560, 0.0
          %623 = vst.msk [vmem:[#allocation5 + $0x68] sm:$0xff] %vm560, 0.0
          %624 = vst.msk [vmem:[#allocation5 + $0x70] sm:$0xff] %vm560, 0.0
          %625 = vst.msk [vmem:[#allocation5 + $0x78] sm:$0xff] %vm560, 0.0
        $region56: #{tpu_custom_call.1} parent=47 // pred_fallthru
          _
        %v626 = vld [vmem:[%s415] sm:$0xff]
        %v627 = vld [vmem:[%s415 + $0x8] sm:$0xff]
        %v628 = vld [vmem:[%s415 + $0x10] sm:$0xff]
        %v629 = vld [vmem:[%s415 + $0x18] sm:$0xff]
        %v630 = vld [vmem:[%s415 + $0x20] sm:$0xff]
        %v631 = vld [vmem:[%s415 + $0x28] sm:$0xff]
        %v632 = vld [vmem:[%s415 + $0x30] sm:$0xff]
        %v633 = vld [vmem:[%s415 + $0x38] sm:$0xff]
        %v634 = vld [vmem:[%s415 + $0x40] sm:$0xff]
        %v635 = vld [vmem:[%s415 + $0x48] sm:$0xff]
        %v636 = vld [vmem:[%s415 + $0x50] sm:$0xff]
        %v637 = vld [vmem:[%s415 + $0x58] sm:$0xff]
        %v638 = vld [vmem:[%s415 + $0x60] sm:$0xff]
        %v639 = vld [vmem:[%s415 + $0x68] sm:$0xff]
        %v640 = vld [vmem:[%s415 + $0x70] sm:$0xff]
        %v641 = vld [vmem:[%s415 + $0x78] sm:$0xff]
        %v642 = vld [vmem:[%s426] sm:$0xff]
        %v643 = vld [vmem:[%s426 + $0x8] sm:$0xff]
        %v644 = vld [vmem:[%s426 + $0x10] sm:$0xff]
        %v645 = vld [vmem:[%s426 + $0x18] sm:$0xff]
        %v646 = vld [vmem:[%s426 + $0x20] sm:$0xff]
        %v647 = vld [vmem:[%s426 + $0x28] sm:$0xff]
        %v648 = vld [vmem:[%s426 + $0x30] sm:$0xff]
        %v649 = vld [vmem:[%s426 + $0x38] sm:$0xff]
        %v650 = vld [vmem:[%s426 + $0x40] sm:$0xff]
        %v651 = vld [vmem:[%s426 + $0x48] sm:$0xff]
        %v652 = vld [vmem:[%s426 + $0x50] sm:$0xff]
        %v653 = vld [vmem:[%s426 + $0x58] sm:$0xff]
        %v654 = vld [vmem:[%s426 + $0x60] sm:$0xff]
        %v655 = vld [vmem:[%s426 + $0x68] sm:$0xff]
        %v656 = vld [vmem:[%s426 + $0x70] sm:$0xff]
        %v657 = vld [vmem:[%s426 + $0x78] sm:$0xff]
        %658 = vmatpush.msra.mxu0 %v657
        %659 = vmatpush.msra.mxu0 %v656
        %660 = vmatpush.msra.mxu0 %v655
        %661 = vmatpush.msra.mxu0 %v654
        %662 = vmatpush.msra.mxu0 %v653
        %663 = vmatpush.msra.mxu0 %v652
        %664 = vmatpush.msra.mxu0 %v651
        %665 = vmatpush.msra.mxu0 %v650
        %666 = vmatpush.msra.mxu0 %v649
        %667 = vmatpush.msra.mxu0 %v648
        %668 = vmatpush.msra.mxu0 %v647
        %669 = vmatpush.msra.mxu0 %v646
        %670 = vmatpush.msra.mxu0 %v645
        %671 = vmatpush.msra.mxu0 %v644
        %672 = vmatpush.msra.mxu0 %v643
        %673 = vmatpush.msra.mxu0 %v642
        %674 = vmatmul.f32.gmra.mxu0 %v626
        %v675 = vpop.f32.mrf.mxu0
        %v676 = vadd.f32 0.0, %v675
        %677 = vmatmul.f32.gmra.mxu0 %v627
        %v678 = vpop.f32.mrf.mxu0
        %v679 = vadd.f32 0.0, %v678
        %680 = vmatmul.f32.gmra.mxu0 %v628
        %v681 = vpop.f32.mrf.mxu0
        %v682 = vadd.f32 0.0, %v681
        %683 = vmatmul.f32.gmra.mxu0 %v629
        %v684 = vpop.f32.mrf.mxu0
        %v685 = vadd.f32 0.0, %v684
        %686 = vmatmul.f32.gmra.mxu0 %v630
        %v687 = vpop.f32.mrf.mxu0
        %v688 = vadd.f32 0.0, %v687
        %689 = vmatmul.f32.gmra.mxu0 %v631
        %v690 = vpop.f32.mrf.mxu0
        %v691 = vadd.f32 0.0, %v690
        %692 = vmatmul.f32.gmra.mxu0 %v632
        %v693 = vpop.f32.mrf.mxu0
        %v694 = vadd.f32 0.0, %v693
        %695 = vmatmul.f32.gmra.mxu0 %v633
        %v696 = vpop.f32.mrf.mxu0
        %v697 = vadd.f32 0.0, %v696
        %698 = vmatmul.f32.gmra.mxu0 %v634
        %v699 = vpop.f32.mrf.mxu0
        %v700 = vadd.f32 0.0, %v699
        %701 = vmatmul.f32.gmra.mxu0 %v635
        %v702 = vpop.f32.mrf.mxu0
        %v703 = vadd.f32 0.0, %v702
        %704 = vmatmul.f32.gmra.mxu0 %v636
        %v705 = vpop.f32.mrf.mxu0
        %v706 = vadd.f32 0.0, %v705
        %707 = vmatmul.f32.gmra.mxu0 %v637
        %v708 = vpop.f32.mrf.mxu0
        %v709 = vadd.f32 0.0, %v708
        %710 = vmatmul.f32.gmra.mxu0 %v638
        %v711 = vpop.f32.mrf.mxu0
        %v712 = vadd.f32 0.0, %v711
        %713 = vmatmul.f32.gmra.mxu0 %v639
        %v714 = vpop.f32.mrf.mxu0
        %v715 = vadd.f32 0.0, %v714
        %716 = vmatmul.f32.gmra.mxu0 %v640
        %v717 = vpop.f32.mrf.mxu0
        %v718 = vadd.f32 0.0, %v717
        %719 = vmatmul.f32.gmra.mxu0 %v641
        %v720 = vpop.f32.mrf.mxu0
        %v721 = vadd.f32 0.0, %v720
        %722 = vdwg.mxu0
        %v723 = vld [vmem:[%s431] sm:$0xff]
        %v724 = vld [vmem:[%s431 + $0x8] sm:$0xff]
        %v725 = vld [vmem:[%s431 + $0x10] sm:$0xff]
        %v726 = vld [vmem:[%s431 + $0x18] sm:$0xff]
        %v727 = vld [vmem:[%s431 + $0x20] sm:$0xff]
        %v728 = vld [vmem:[%s431 + $0x28] sm:$0xff]
        %v729 = vld [vmem:[%s431 + $0x30] sm:$0xff]
        %v730 = vld [vmem:[%s431 + $0x38] sm:$0xff]
        %v731 = vld [vmem:[%s431 + $0x40] sm:$0xff]
        %v732 = vld [vmem:[%s431 + $0x48] sm:$0xff]
        %v733 = vld [vmem:[%s431 + $0x50] sm:$0xff]
        %v734 = vld [vmem:[%s431 + $0x58] sm:$0xff]
        %v735 = vld [vmem:[%s431 + $0x60] sm:$0xff]
        %v736 = vld [vmem:[%s431 + $0x68] sm:$0xff]
        %v737 = vld [vmem:[%s431 + $0x70] sm:$0xff]
        %v738 = vld [vmem:[%s431 + $0x78] sm:$0xff]
        %739 = vmatpush.msra.mxu0 %v738
        %740 = vmatpush.msra.mxu0 %v737
        %741 = vmatpush.msra.mxu0 %v736
        %742 = vmatpush.msra.mxu0 %v735
        %743 = vmatpush.msra.mxu0 %v734
        %744 = vmatpush.msra.mxu0 %v733
        %745 = vmatpush.msra.mxu0 %v732
        %746 = vmatpush.msra.mxu0 %v731
        %747 = vmatpush.msra.mxu0 %v730
        %748 = vmatpush.msra.mxu0 %v729
        %749 = vmatpush.msra.mxu0 %v728
        %750 = vmatpush.msra.mxu0 %v727
        %751 = vmatpush.msra.mxu0 %v726
        %752 = vmatpush.msra.mxu0 %v725
        %753 = vmatpush.msra.mxu0 %v724
        %754 = vmatpush.msra.mxu0 %v723
        %755 = vmatmul.f32.gmra.mxu0 %v626
        %v756 = vpop.f32.mrf.mxu0
        %v757 = vadd.f32 0.0, %v756
        %758 = vmatmul.f32.gmra.mxu0 %v627
        %v759 = vpop.f32.mrf.mxu0
        %v760 = vadd.f32 0.0, %v759
        %761 = vmatmul.f32.gmra.mxu0 %v628
        %v762 = vpop.f32.mrf.mxu0
        %v763 = vadd.f32 0.0, %v762
        %764 = vmatmul.f32.gmra.mxu0 %v629
        %v765 = vpop.f32.mrf.mxu0
        %v766 = vadd.f32 0.0, %v765
        %767 = vmatmul.f32.gmra.mxu0 %v630
        %v768 = vpop.f32.mrf.mxu0
        %v769 = vadd.f32 0.0, %v768
        %770 = vmatmul.f32.gmra.mxu0 %v631
        %v771 = vpop.f32.mrf.mxu0
        %v772 = vadd.f32 0.0, %v771
        %773 = vmatmul.f32.gmra.mxu0 %v632
        %v774 = vpop.f32.mrf.mxu0
        %v775 = vadd.f32 0.0, %v774
        %776 = vmatmul.f32.gmra.mxu0 %v633
        %v777 = vpop.f32.mrf.mxu0
        %v778 = vadd.f32 0.0, %v777
        %779 = vmatmul.f32.gmra.mxu0 %v634
        %v780 = vpop.f32.mrf.mxu0
        %v781 = vadd.f32 0.0, %v780
        %782 = vmatmul.f32.gmra.mxu0 %v635
        %v783 = vpop.f32.mrf.mxu0
        %v784 = vadd.f32 0.0, %v783
        %785 = vmatmul.f32.gmra.mxu0 %v636
        %v786 = vpop.f32.mrf.mxu0
        %v787 = vadd.f32 0.0, %v786
        %788 = vmatmul.f32.gmra.mxu0 %v637
        %v789 = vpop.f32.mrf.mxu0
        %v790 = vadd.f32 0.0, %v789
        %791 = vmatmul.f32.gmra.mxu0 %v638
        %v792 = vpop.f32.mrf.mxu0
        %v793 = vadd.f32 0.0, %v792
        %794 = vmatmul.f32.gmra.mxu0 %v639
        %v795 = vpop.f32.mrf.mxu0
        %v796 = vadd.f32 0.0, %v795
        %797 = vmatmul.f32.gmra.mxu0 %v640
        %v798 = vpop.f32.mrf.mxu0
        %v799 = vadd.f32 0.0, %v798
        %800 = vmatmul.f32.gmra.mxu0 %v641
        %v801 = vpop.f32.mrf.mxu0
        %v802 = vadd.f32 0.0, %v801
        %803 = vdwg.mxu0
        %v804 = vld [vmem:[#allocation2] sm:$0xff]
        %v805 = vld [vmem:[#allocation2 + $0x8] sm:$0xff]
        %v806 = vld [vmem:[#allocation2 + $0x10] sm:$0xff]
        %v807 = vld [vmem:[#allocation2 + $0x18] sm:$0xff]
        %v808 = vld [vmem:[#allocation2 + $0x20] sm:$0xff]
        %v809 = vld [vmem:[#allocation2 + $0x28] sm:$0xff]
        %v810 = vld [vmem:[#allocation2 + $0x30] sm:$0xff]
        %v811 = vld [vmem:[#allocation2 + $0x38] sm:$0xff]
        %v812 = vld [vmem:[#allocation2 + $0x40] sm:$0xff]
        %v813 = vld [vmem:[#allocation2 + $0x48] sm:$0xff]
        %v814 = vld [vmem:[#allocation2 + $0x50] sm:$0xff]
        %v815 = vld [vmem:[#allocation2 + $0x58] sm:$0xff]
        %v816 = vld [vmem:[#allocation2 + $0x60] sm:$0xff]
        %v817 = vld [vmem:[#allocation2 + $0x68] sm:$0xff]
        %v818 = vld [vmem:[#allocation2 + $0x70] sm:$0xff]
        %v819 = vld [vmem:[#allocation2 + $0x78] sm:$0xff]
        %vm820 = vcmask 261120
        %v822 = vsel %vm820, %v804, 0
        %v825 = vsel %vm820, %v805, 0
        %v828 = vsel %vm820, %v806, 0
        %v831 = vsel %vm820, %v807, 0
        %v834 = vsel %vm820, %v808, 0
        %v837 = vsel %vm820, %v809, 0
        %v840 = vsel %vm820, %v810, 0
        %v843 = vsel %vm820, %v811, 0
        %v846 = vsel %vm820, %v812, 0
        %v849 = vsel %vm820, %v813, 0
        %v852 = vsel %vm820, %v814, 0
        %v855 = vsel %vm820, %v815, 0
        %v858 = vsel %vm820, %v816, 0
        %v861 = vsel %vm820, %v817, 0
        %v864 = vsel %vm820, %v818, 0
        %v867 = vsel %vm820, %v819, 0
        %v870 = vsel %vm820, %v676, 0
        %v873 = vsel %vm820, %v679, 0
        %v876 = vsel %vm820, %v682, 0
        %v879 = vsel %vm820, %v685, 0
        %v882 = vsel %vm820, %v688, 0
        %v885 = vsel %vm820, %v691, 0
        %v888 = vsel %vm820, %v694, 0
        %v891 = vsel %vm820, %v697, 0
        %v894 = vsel %vm820, %v700, 0
        %v897 = vsel %vm820, %v703, 0
        %v900 = vsel %vm820, %v706, 0
        %v903 = vsel %vm820, %v709, 0
        %v906 = vsel %vm820, %v712, 0
        %v909 = vsel %vm820, %v715, 0
        %v912 = vsel %vm820, %v718, 0
        %v915 = vsel %vm820, %v721, 0
        %917 = vmatpush.xpose.msra.mxu0 %v915
        %918 = vmatpush.xpose.msra.mxu0 %v912
        %919 = vmatpush.xpose.msra.mxu0 %v909
        %920 = vmatpush.xpose.msra.mxu0 %v906
        %921 = vmatpush.xpose.msra.mxu0 %v903
        %922 = vmatpush.xpose.msra.mxu0 %v900
        %923 = vmatpush.xpose.msra.mxu0 %v897
        %924 = vmatpush.xpose.msra.mxu0 %v894
        %925 = vmatpush.xpose.msra.mxu0 %v891
        %926 = vmatpush.xpose.msra.mxu0 %v888
        %927 = vmatpush.xpose.msra.mxu0 %v885
        %928 = vmatpush.xpose.msra.mxu0 %v882
        %929 = vmatpush.xpose.msra.mxu0 %v879
        %930 = vmatpush.xpose.msra.mxu0 %v876
        %931 = vmatpush.xpose.msra.mxu0 %v873
        %932 = vmatpush.xpose.msra.mxu0 %v870
        %933 = vmatmul.f32.gmra.mxu0 %v822
        %v934 = vpop.f32.mrf.mxu0
        %v935 = vadd.f32 0.0, %v934
        %936 = vmatmul.f32.gmra.mxu0 %v825
        %v937 = vpop.f32.mrf.mxu0
        %v938 = vadd.f32 0.0, %v937
        %939 = vmatmul.f32.gmra.mxu0 %v828
        %v940 = vpop.f32.mrf.mxu0
        %v941 = vadd.f32 0.0, %v940
        %942 = vmatmul.f32.gmra.mxu0 %v831
        %v943 = vpop.f32.mrf.mxu0
        %v944 = vadd.f32 0.0, %v943
        %945 = vmatmul.f32.gmra.mxu0 %v834
        %v946 = vpop.f32.mrf.mxu0
        %v947 = vadd.f32 0.0, %v946
        %948 = vmatmul.f32.gmra.mxu0 %v837
        %v949 = vpop.f32.mrf.mxu0
        %v950 = vadd.f32 0.0, %v949
        %951 = vmatmul.f32.gmra.mxu0 %v840
        %v952 = vpop.f32.mrf.mxu0
        %v953 = vadd.f32 0.0, %v952
        %954 = vmatmul.f32.gmra.mxu0 %v843
        %v955 = vpop.f32.mrf.mxu0
        %v956 = vadd.f32 0.0, %v955
        %957 = vmatmul.f32.gmra.mxu0 %v846
        %v958 = vpop.f32.mrf.mxu0
        %v959 = vadd.f32 0.0, %v958
        %960 = vmatmul.f32.gmra.mxu0 %v849
        %v961 = vpop.f32.mrf.mxu0
        %v962 = vadd.f32 0.0, %v961
        %963 = vmatmul.f32.gmra.mxu0 %v852
        %v964 = vpop.f32.mrf.mxu0
        %v965 = vadd.f32 0.0, %v964
        %966 = vmatmul.f32.gmra.mxu0 %v855
        %v967 = vpop.f32.mrf.mxu0
        %v968 = vadd.f32 0.0, %v967
        %969 = vmatmul.f32.gmra.mxu0 %v858
        %v970 = vpop.f32.mrf.mxu0
        %v971 = vadd.f32 0.0, %v970
        %972 = vmatmul.f32.gmra.mxu0 %v861
        %v973 = vpop.f32.mrf.mxu0
        %v974 = vadd.f32 0.0, %v973
        %975 = vmatmul.f32.gmra.mxu0 %v864
        %v976 = vpop.f32.mrf.mxu0
        %v977 = vadd.f32 0.0, %v976
        %978 = vmatmul.f32.gmra.mxu0 %v867
        %v979 = vpop.f32.mrf.mxu0
        %v980 = vadd.f32 0.0, %v979
        %981 = vdwg.mxu0
        %v982 = vld [vmem:[#allocation3] sm:$0xff]
        %v983 = vld [vmem:[#allocation3 + $0x8] sm:$0xff]
        %v984 = vld [vmem:[#allocation3 + $0x10] sm:$0xff]
        %v985 = vld [vmem:[#allocation3 + $0x18] sm:$0xff]
        %v986 = vld [vmem:[#allocation3 + $0x20] sm:$0xff]
        %v987 = vld [vmem:[#allocation3 + $0x28] sm:$0xff]
        %v988 = vld [vmem:[#allocation3 + $0x30] sm:$0xff]
        %v989 = vld [vmem:[#allocation3 + $0x38] sm:$0xff]
        %v990 = vld [vmem:[#allocation3 + $0x40] sm:$0xff]
        %v991 = vld [vmem:[#allocation3 + $0x48] sm:$0xff]
        %v992 = vld [vmem:[#allocation3 + $0x50] sm:$0xff]
        %v993 = vld [vmem:[#allocation3 + $0x58] sm:$0xff]
        %v994 = vld [vmem:[#allocation3 + $0x60] sm:$0xff]
        %v995 = vld [vmem:[#allocation3 + $0x68] sm:$0xff]
        %v996 = vld [vmem:[#allocation3 + $0x70] sm:$0xff]
        %v997 = vld [vmem:[#allocation3 + $0x78] sm:$0xff]
        %998 = vmax.xlane.f32.xlu0 %v935
        %v999 = vpop.xlane.xlu0 %998
        %1000 = vmax.xlane.f32.xlu0 %v938
        %v1001 = vpop.xlane.xlu0 %1000
        %1002 = vmax.xlane.f32.xlu0 %v941
        %v1003 = vpop.xlane.xlu0 %1002
        %1004 = vmax.xlane.f32.xlu0 %v944
        %v1005 = vpop.xlane.xlu0 %1004
        %1006 = vmax.xlane.f32.xlu0 %v947
        %v1007 = vpop.xlane.xlu0 %1006
        %1008 = vmax.xlane.f32.xlu0 %v950
        %v1009 = vpop.xlane.xlu0 %1008
        %1010 = vmax.xlane.f32.xlu0 %v953
        %v1011 = vpop.xlane.xlu0 %1010
        %1012 = vmax.xlane.f32.xlu0 %v956
        %v1013 = vpop.xlane.xlu0 %1012
        %1014 = vmax.xlane.f32.xlu0 %v959
        %v1015 = vpop.xlane.xlu0 %1014
        %1016 = vmax.xlane.f32.xlu0 %v962
        %v1017 = vpop.xlane.xlu0 %1016
        %1018 = vmax.xlane.f32.xlu0 %v965
        %v1019 = vpop.xlane.xlu0 %1018
        %1020 = vmax.xlane.f32.xlu0 %v968
        %v1021 = vpop.xlane.xlu0 %1020
        %1022 = vmax.xlane.f32.xlu0 %v971
        %v1023 = vpop.xlane.xlu0 %1022
        %1024 = vmax.xlane.f32.xlu0 %v974
        %v1025 = vpop.xlane.xlu0 %1024
        %1026 = vmax.xlane.f32.xlu0 %v977
        %v1027 = vpop.xlane.xlu0 %1026
        %1028 = vmax.xlane.f32.xlu0 %v980
        %v1029 = vpop.xlane.xlu0 %1028
        %v1030 = vmax.f32 %v982, %v999
        %v1031 = vmax.f32 %v983, %v1001
        %v1032 = vmax.f32 %v984, %v1003
        %v1033 = vmax.f32 %v985, %v1005
        %v1034 = vmax.f32 %v986, %v1007
        %v1035 = vmax.f32 %v987, %v1009
        %v1036 = vmax.f32 %v988, %v1011
        %v1037 = vmax.f32 %v989, %v1013
        %v1038 = vmax.f32 %v990, %v1015
        %v1039 = vmax.f32 %v991, %v1017
        %v1040 = vmax.f32 %v992, %v1019
        %v1041 = vmax.f32 %v993, %v1021
        %v1042 = vmax.f32 %v994, %v1023
        %v1043 = vmax.f32 %v995, %v1025
        %v1044 = vmax.f32 %v996, %v1027
        %v1045 = vmax.f32 %v997, %v1029
        %v1046 = vsub.f32 %v982, %v1030
        %v1047 = vsub.f32 %v983, %v1031
        %v1048 = vsub.f32 %v984, %v1032
        %v1049 = vsub.f32 %v985, %v1033
        %v1050 = vsub.f32 %v986, %v1034
        %v1051 = vsub.f32 %v987, %v1035
        %v1052 = vsub.f32 %v988, %v1036
        %v1053 = vsub.f32 %v989, %v1037
        %v1054 = vsub.f32 %v990, %v1038
        %v1055 = vsub.f32 %v991, %v1039
        %v1056 = vsub.f32 %v992, %v1040
        %v1057 = vsub.f32 %v993, %v1041
        %v1058 = vsub.f32 %v994, %v1042
        %v1059 = vsub.f32 %v995, %v1043
        %v1060 = vsub.f32 %v996, %v1044
        %v1061 = vsub.f32 %v997, %v1045
        %v1062 = vmul.f32 %v1046, 1.442695
        %v1063 = vpow.pop %v1062
        %v1064 = vmul.f32 %v1047, 1.442695
        %v1065 = vpow.pop %v1064
        %v1066 = vmul.f32 %v1048, 1.442695
        %v1067 = vpow.pop %v1066
        %v1068 = vmul.f32 %v1049, 1.442695
        %v1069 = vpow.pop %v1068
        %v1070 = vmul.f32 %v1050, 1.442695
        %v1071 = vpow.pop %v1070
        %v1072 = vmul.f32 %v1051, 1.442695
        %v1073 = vpow.pop %v1072
        %v1074 = vmul.f32 %v1052, 1.442695
        %v1075 = vpow.pop %v1074
        %v1076 = vmul.f32 %v1053, 1.442695
        %v1077 = vpow.pop %v1076
        %v1078 = vmul.f32 %v1054, 1.442695
        %v1079 = vpow.pop %v1078
        %v1080 = vmul.f32 %v1055, 1.442695
        %v1081 = vpow.pop %v1080
        %v1082 = vmul.f32 %v1056, 1.442695
        %v1083 = vpow.pop %v1082
        %v1084 = vmul.f32 %v1057, 1.442695
        %v1085 = vpow.pop %v1084
        %v1086 = vmul.f32 %v1058, 1.442695
        %v1087 = vpow.pop %v1086
        %v1088 = vmul.f32 %v1059, 1.442695
        %v1089 = vpow.pop %v1088
        %v1090 = vmul.f32 %v1060, 1.442695
        %v1091 = vpow.pop %v1090
        %v1092 = vmul.f32 %v1061, 1.442695
        %v1093 = vpow.pop %v1092
        %1095 = vset.pattern.permute.xlu0 0
        %1096 = vperm.xlu0 %1095, %v1030
        %v1097 = vpop.permute.xlu0 %1096
        %1100 = vset.pattern.permute.xlu0 0
        %1101 = vperm.xlu0 %1100, %v1031
        %v1102 = vpop.permute.xlu0 %1101
        %1105 = vset.pattern.permute.xlu0 0
        %1106 = vperm.xlu0 %1105, %v1032
        %v1107 = vpop.permute.xlu0 %1106
        %1110 = vset.pattern.permute.xlu0 0
        %1111 = vperm.xlu0 %1110, %v1033
        %v1112 = vpop.permute.xlu0 %1111
        %1115 = vset.pattern.permute.xlu0 0
        %1116 = vperm.xlu0 %1115, %v1034
        %v1117 = vpop.permute.xlu0 %1116
        %1120 = vset.pattern.permute.xlu0 0
        %1121 = vperm.xlu0 %1120, %v1035
        %v1122 = vpop.permute.xlu0 %1121
        %1125 = vset.pattern.permute.xlu0 0
        %1126 = vperm.xlu0 %1125, %v1036
        %v1127 = vpop.permute.xlu0 %1126
        %1130 = vset.pattern.permute.xlu0 0
        %1131 = vperm.xlu0 %1130, %v1037
        %v1132 = vpop.permute.xlu0 %1131
        %1135 = vset.pattern.permute.xlu0 0
        %1136 = vperm.xlu0 %1135, %v1038
        %v1137 = vpop.permute.xlu0 %1136
        %1140 = vset.pattern.permute.xlu0 0
        %1141 = vperm.xlu0 %1140, %v1039
        %v1142 = vpop.permute.xlu0 %1141
        %1145 = vset.pattern.permute.xlu0 0
        %1146 = vperm.xlu0 %1145, %v1040
        %v1147 = vpop.permute.xlu0 %1146
        %1150 = vset.pattern.permute.xlu0 0
        %1151 = vperm.xlu0 %1150, %v1041
        %v1152 = vpop.permute.xlu0 %1151
        %1155 = vset.pattern.permute.xlu0 0
        %1156 = vperm.xlu0 %1155, %v1042
        %v1157 = vpop.permute.xlu0 %1156
        %1160 = vset.pattern.permute.xlu0 0
        %1161 = vperm.xlu0 %1160, %v1043
        %v1162 = vpop.permute.xlu0 %1161
        %1165 = vset.pattern.permute.xlu0 0
        %1166 = vperm.xlu0 %1165, %v1044
        %v1167 = vpop.permute.xlu0 %1166
        %1170 = vset.pattern.permute.xlu0 0
        %1171 = vperm.xlu0 %1170, %v1045
        %v1172 = vpop.permute.xlu0 %1171
        %v1174 = vsub.f32 %v935, %v1097
        %v1175 = vsub.f32 %v938, %v1102
        %v1176 = vsub.f32 %v941, %v1107
        %v1177 = vsub.f32 %v944, %v1112
        %v1178 = vsub.f32 %v947, %v1117
        %v1179 = vsub.f32 %v950, %v1122
        %v1180 = vsub.f32 %v953, %v1127
        %v1181 = vsub.f32 %v956, %v1132
        %v1182 = vsub.f32 %v959, %v1137
        %v1183 = vsub.f32 %v962, %v1142
        %v1184 = vsub.f32 %v965, %v1147
        %v1185 = vsub.f32 %v968, %v1152
        %v1186 = vsub.f32 %v971, %v1157
        %v1187 = vsub.f32 %v974, %v1162
        %v1188 = vsub.f32 %v977, %v1167
        %v1189 = vsub.f32 %v980, %v1172
        %v1190 = vmul.f32 %v1174, 1.442695
        %v1191 = vpow.pop %v1190
        %v1192 = vmul.f32 %v1175, 1.442695
        %v1193 = vpow.pop %v1192
        %v1194 = vmul.f32 %v1176, 1.442695
        %v1195 = vpow.pop %v1194
        %v1196 = vmul.f32 %v1177, 1.442695
        %v1197 = vpow.pop %v1196
        %v1198 = vmul.f32 %v1178, 1.442695
        %v1199 = vpow.pop %v1198
        %v1200 = vmul.f32 %v1179, 1.442695
        %v1201 = vpow.pop %v1200
        %v1202 = vmul.f32 %v1180, 1.442695
        %v1203 = vpow.pop %v1202
        %v1204 = vmul.f32 %v1181, 1.442695
        %v1205 = vpow.pop %v1204
        %v1206 = vmul.f32 %v1182, 1.442695
        %v1207 = vpow.pop %v1206
        %v1208 = vmul.f32 %v1183, 1.442695
        %v1209 = vpow.pop %v1208
        %v1210 = vmul.f32 %v1184, 1.442695
        %v1211 = vpow.pop %v1210
        %v1212 = vmul.f32 %v1185, 1.442695
        %v1213 = vpow.pop %v1212
        %v1214 = vmul.f32 %v1186, 1.442695
        %v1215 = vpow.pop %v1214
        %v1216 = vmul.f32 %v1187, 1.442695
        %v1217 = vpow.pop %v1216
        %v1218 = vmul.f32 %v1188, 1.442695
        %v1219 = vpow.pop %v1218
        %v1220 = vmul.f32 %v1189, 1.442695
        %v1221 = vpow.pop %v1220
        %v1222 = vld [vmem:[#allocation4] sm:$0xff]
        %v1223 = vld [vmem:[#allocation4 + $0x8] sm:$0xff]
        %v1224 = vld [vmem:[#allocation4 + $0x10] sm:$0xff]
        %v1225 = vld [vmem:[#allocation4 + $0x18] sm:$0xff]
        %v1226 = vld [vmem:[#allocation4 + $0x20] sm:$0xff]
        %v1227 = vld [vmem:[#allocation4 + $0x28] sm:$0xff]
        %v1228 = vld [vmem:[#allocation4 + $0x30] sm:$0xff]
        %v1229 = vld [vmem:[#allocation4 + $0x38] sm:$0xff]
        %v1230 = vld [vmem:[#allocation4 + $0x40] sm:$0xff]
        %v1231 = vld [vmem:[#allocation4 + $0x48] sm:$0xff]
        %v1232 = vld [vmem:[#allocation4 + $0x50] sm:$0xff]
        %v1233 = vld [vmem:[#allocation4 + $0x58] sm:$0xff]
        %v1234 = vld [vmem:[#allocation4 + $0x60] sm:$0xff]
        %v1235 = vld [vmem:[#allocation4 + $0x68] sm:$0xff]
        %v1236 = vld [vmem:[#allocation4 + $0x70] sm:$0xff]
        %v1237 = vld [vmem:[#allocation4 + $0x78] sm:$0xff]
        %v1238 = vmul.f32 %v1063, %v1222
        %v1239 = vmul.f32 %v1065, %v1223
        %v1240 = vmul.f32 %v1067, %v1224
        %v1241 = vmul.f32 %v1069, %v1225
        %v1242 = vmul.f32 %v1071, %v1226
        %v1243 = vmul.f32 %v1073, %v1227
        %v1244 = vmul.f32 %v1075, %v1228
        %v1245 = vmul.f32 %v1077, %v1229
        %v1246 = vmul.f32 %v1079, %v1230
        %v1247 = vmul.f32 %v1081, %v1231
        %v1248 = vmul.f32 %v1083, %v1232
        %v1249 = vmul.f32 %v1085, %v1233
        %v1250 = vmul.f32 %v1087, %v1234
        %v1251 = vmul.f32 %v1089, %v1235
        %v1252 = vmul.f32 %v1091, %v1236
        %v1253 = vmul.f32 %v1093, %v1237
        %1254 = vadd.xlane.f32.xlu0 %v1191
        %v1255 = vpop.xlane.xlu0 %1254
        %1256 = vadd.xlane.f32.xlu0 %v1193
        %v1257 = vpop.xlane.xlu0 %1256
        %1258 = vadd.xlane.f32.xlu0 %v1195
        %v1259 = vpop.xlane.xlu0 %1258
        %1260 = vadd.xlane.f32.xlu0 %v1197
        %v1261 = vpop.xlane.xlu0 %1260
        %1262 = vadd.xlane.f32.xlu0 %v1199
        %v1263 = vpop.xlane.xlu0 %1262
        %1264 = vadd.xlane.f32.xlu0 %v1201
        %v1265 = vpop.xlane.xlu0 %1264
        %1266 = vadd.xlane.f32.xlu0 %v1203
        %v1267 = vpop.xlane.xlu0 %1266
        %1268 = vadd.xlane.f32.xlu0 %v1205
        %v1269 = vpop.xlane.xlu0 %1268
        %1270 = vadd.xlane.f32.xlu0 %v1207
        %v1271 = vpop.xlane.xlu0 %1270
        %1272 = vadd.xlane.f32.xlu0 %v1209
        %v1273 = vpop.xlane.xlu0 %1272
        %1274 = vadd.xlane.f32.xlu0 %v1211
        %v1275 = vpop.xlane.xlu0 %1274
        %1276 = vadd.xlane.f32.xlu0 %v1213
        %v1277 = vpop.xlane.xlu0 %1276
        %1278 = vadd.xlane.f32.xlu0 %v1215
        %v1279 = vpop.xlane.xlu0 %1278
        %1280 = vadd.xlane.f32.xlu0 %v1217
        %v1281 = vpop.xlane.xlu0 %1280
        %1282 = vadd.xlane.f32.xlu0 %v1219
        %v1283 = vpop.xlane.xlu0 %1282
        %1284 = vadd.xlane.f32.xlu0 %v1221
        %v1285 = vpop.xlane.xlu0 %1284
        %v1286 = vadd.f32 %v1238, %v1255
        %v1287 = vadd.f32 %v1239, %v1257
        %v1288 = vadd.f32 %v1240, %v1259
        %v1289 = vadd.f32 %v1241, %v1261
        %v1290 = vadd.f32 %v1242, %v1263
        %v1291 = vadd.f32 %v1243, %v1265
        %v1292 = vadd.f32 %v1244, %v1267
        %v1293 = vadd.f32 %v1245, %v1269
        %v1294 = vadd.f32 %v1246, %v1271
        %v1295 = vadd.f32 %v1247, %v1273
        %v1296 = vadd.f32 %v1248, %v1275
        %v1297 = vadd.f32 %v1249, %v1277
        %v1298 = vadd.f32 %v1250, %v1279
        %v1299 = vadd.f32 %v1251, %v1281
        %v1300 = vadd.f32 %v1252, %v1283
        %v1301 = vadd.f32 %v1253, %v1285
        %vm1302 = vcmask 7168
        %1303 = vst.msk [vmem:[#allocation4] sm:$0xff] %vm1302, %v1286
        %1304 = vst.msk [vmem:[#allocation4 + $0x8] sm:$0xff] %vm1302, %v1287
        %1305 = vst.msk [vmem:[#allocation4 + $0x10] sm:$0xff] %vm1302, %v1288
        %1306 = vst.msk [vmem:[#allocation4 + $0x18] sm:$0xff] %vm1302, %v1289
        %1307 = vst.msk [vmem:[#allocation4 + $0x20] sm:$0xff] %vm1302, %v1290
        %1308 = vst.msk [vmem:[#allocation4 + $0x28] sm:$0xff] %vm1302, %v1291
        %1309 = vst.msk [vmem:[#allocation4 + $0x30] sm:$0xff] %vm1302, %v1292
        %1310 = vst.msk [vmem:[#allocation4 + $0x38] sm:$0xff] %vm1302, %v1293
        %1311 = vst.msk [vmem:[#allocation4 + $0x40] sm:$0xff] %vm1302, %v1294
        %1312 = vst.msk [vmem:[#allocation4 + $0x48] sm:$0xff] %vm1302, %v1295
        %1313 = vst.msk [vmem:[#allocation4 + $0x50] sm:$0xff] %vm1302, %v1296
        %1314 = vst.msk [vmem:[#allocation4 + $0x58] sm:$0xff] %vm1302, %v1297
        %1315 = vst.msk [vmem:[#allocation4 + $0x60] sm:$0xff] %vm1302, %v1298
        %1316 = vst.msk [vmem:[#allocation4 + $0x68] sm:$0xff] %vm1302, %v1299
        %1317 = vst.msk [vmem:[#allocation4 + $0x70] sm:$0xff] %vm1302, %v1300
        %1318 = vst.msk [vmem:[#allocation4 + $0x78] sm:$0xff] %vm1302, %v1301
        %v1319 = vld [vmem:[#allocation5] sm:$0xff]
        %v1320 = vld [vmem:[#allocation5 + $0x8] sm:$0xff]
        %v1321 = vld [vmem:[#allocation5 + $0x10] sm:$0xff]
        %v1322 = vld [vmem:[#allocation5 + $0x18] sm:$0xff]
        %v1323 = vld [vmem:[#allocation5 + $0x20] sm:$0xff]
        %v1324 = vld [vmem:[#allocation5 + $0x28] sm:$0xff]
        %v1325 = vld [vmem:[#allocation5 + $0x30] sm:$0xff]
        %v1326 = vld [vmem:[#allocation5 + $0x38] sm:$0xff]
        %v1327 = vld [vmem:[#allocation5 + $0x40] sm:$0xff]
        %v1328 = vld [vmem:[#allocation5 + $0x48] sm:$0xff]
        %v1329 = vld [vmem:[#allocation5 + $0x50] sm:$0xff]
        %v1330 = vld [vmem:[#allocation5 + $0x58] sm:$0xff]
        %v1331 = vld [vmem:[#allocation5 + $0x60] sm:$0xff]
        %v1332 = vld [vmem:[#allocation5 + $0x68] sm:$0xff]
        %v1333 = vld [vmem:[#allocation5 + $0x70] sm:$0xff]
        %v1334 = vld [vmem:[#allocation5 + $0x78] sm:$0xff]
        %1336 = vset.pattern.permute.xlu0 0
        %1337 = vperm.xlu0 %1336, %v1063
        %v1338 = vpop.permute.xlu0 %1337
        %1341 = vset.pattern.permute.xlu0 0
        %1342 = vperm.xlu0 %1341, %v1065
        %v1343 = vpop.permute.xlu0 %1342
        %1346 = vset.pattern.permute.xlu0 0
        %1347 = vperm.xlu0 %1346, %v1067
        %v1348 = vpop.permute.xlu0 %1347
        %1351 = vset.pattern.permute.xlu0 0
        %1352 = vperm.xlu0 %1351, %v1069
        %v1353 = vpop.permute.xlu0 %1352
        %1356 = vset.pattern.permute.xlu0 0
        %1357 = vperm.xlu0 %1356, %v1071
        %v1358 = vpop.permute.xlu0 %1357
        %1361 = vset.pattern.permute.xlu0 0
        %1362 = vperm.xlu0 %1361, %v1073
        %v1363 = vpop.permute.xlu0 %1362
        %1366 = vset.pattern.permute.xlu0 0
        %1367 = vperm.xlu0 %1366, %v1075
        %v1368 = vpop.permute.xlu0 %1367
        %1371 = vset.pattern.permute.xlu0 0
        %1372 = vperm.xlu0 %1371, %v1077
        %v1373 = vpop.permute.xlu0 %1372
        %1376 = vset.pattern.permute.xlu0 0
        %1377 = vperm.xlu0 %1376, %v1079
        %v1378 = vpop.permute.xlu0 %1377
        %1381 = vset.pattern.permute.xlu0 0
        %1382 = vperm.xlu0 %1381, %v1081
        %v1383 = vpop.permute.xlu0 %1382
        %1386 = vset.pattern.permute.xlu0 0
        %1387 = vperm.xlu0 %1386, %v1083
        %v1388 = vpop.permute.xlu0 %1387
        %1391 = vset.pattern.permute.xlu0 0
        %1392 = vperm.xlu0 %1391, %v1085
        %v1393 = vpop.permute.xlu0 %1392
        %1396 = vset.pattern.permute.xlu0 0
        %1397 = vperm.xlu0 %1396, %v1087
        %v1398 = vpop.permute.xlu0 %1397
        %1401 = vset.pattern.permute.xlu0 0
        %1402 = vperm.xlu0 %1401, %v1089
        %v1403 = vpop.permute.xlu0 %1402
        %1406 = vset.pattern.permute.xlu0 0
        %1407 = vperm.xlu0 %1406, %v1091
        %v1408 = vpop.permute.xlu0 %1407
        %1411 = vset.pattern.permute.xlu0 0
        %1412 = vperm.xlu0 %1411, %v1093
        %v1413 = vpop.permute.xlu0 %1412
        %v1415 = vmul.f32 %v1338, %v1319
        %v1416 = vmul.f32 %v1343, %v1320
        %v1417 = vmul.f32 %v1348, %v1321
        %v1418 = vmul.f32 %v1353, %v1322
        %v1419 = vmul.f32 %v1358, %v1323
        %v1420 = vmul.f32 %v1363, %v1324
        %v1421 = vmul.f32 %v1368, %v1325
        %v1422 = vmul.f32 %v1373, %v1326
        %v1423 = vmul.f32 %v1378, %v1327
        %v1424 = vmul.f32 %v1383, %v1328
        %v1425 = vmul.f32 %v1388, %v1329
        %v1426 = vmul.f32 %v1393, %v1330
        %v1427 = vmul.f32 %v1398, %v1331
        %v1428 = vmul.f32 %v1403, %v1332
        %v1429 = vmul.f32 %v1408, %v1333
        %v1430 = vmul.f32 %v1413, %v1334
        %1431 = vmatpush.msra.mxu0 %v802
        %1432 = vmatpush.msra.mxu0 %v799
        %1433 = vmatpush.msra.mxu0 %v796
        %1434 = vmatpush.msra.mxu0 %v793
        %1435 = vmatpush.msra.mxu0 %v790
        %1436 = vmatpush.msra.mxu0 %v787
        %1437 = vmatpush.msra.mxu0 %v784
        %1438 = vmatpush.msra.mxu0 %v781
        %1439 = vmatpush.msra.mxu0 %v778
        %1440 = vmatpush.msra.mxu0 %v775
        %1441 = vmatpush.msra.mxu0 %v772
        %1442 = vmatpush.msra.mxu0 %v769
        %1443 = vmatpush.msra.mxu0 %v766
        %1444 = vmatpush.msra.mxu0 %v763
        %1445 = vmatpush.msra.mxu0 %v760
        %1446 = vmatpush.msra.mxu0 %v757
        %1447 = vmatmul.f32.gmra.mxu0 %v1191
        %v1448 = vpop.f32.mrf.mxu0
        %v1449 = vadd.f32 0.0, %v1448
        %1450 = vmatmul.f32.gmra.mxu0 %v1193
        %v1451 = vpop.f32.mrf.mxu0
        %v1452 = vadd.f32 0.0, %v1451
        %1453 = vmatmul.f32.gmra.mxu0 %v1195
        %v1454 = vpop.f32.mrf.mxu0
        %v1455 = vadd.f32 0.0, %v1454
        %1456 = vmatmul.f32.gmra.mxu0 %v1197
        %v1457 = vpop.f32.mrf.mxu0
        %v1458 = vadd.f32 0.0, %v1457
        %1459 = vmatmul.f32.gmra.mxu0 %v1199
        %v1460 = vpop.f32.mrf.mxu0
        %v1461 = vadd.f32 0.0, %v1460
        %1462 = vmatmul.f32.gmra.mxu0 %v1201
        %v1463 = vpop.f32.mrf.mxu0
        %v1464 = vadd.f32 0.0, %v1463
        %1465 = vmatmul.f32.gmra.mxu0 %v1203
        %v1466 = vpop.f32.mrf.mxu0
        %v1467 = vadd.f32 0.0, %v1466
        %1468 = vmatmul.f32.gmra.mxu0 %v1205
        %v1469 = vpop.f32.mrf.mxu0
        %v1470 = vadd.f32 0.0, %v1469
        %1471 = vmatmul.f32.gmra.mxu0 %v1207
        %v1472 = vpop.f32.mrf.mxu0
        %v1473 = vadd.f32 0.0, %v1472
        %1474 = vmatmul.f32.gmra.mxu0 %v1209
        %v1475 = vpop.f32.mrf.mxu0
        %v1476 = vadd.f32 0.0, %v1475
        %1477 = vmatmul.f32.gmra.mxu0 %v1211
        %v1478 = vpop.f32.mrf.mxu0
        %v1479 = vadd.f32 0.0, %v1478
        %1480 = vmatmul.f32.gmra.mxu0 %v1213
        %v1481 = vpop.f32.mrf.mxu0
        %v1482 = vadd.f32 0.0, %v1481
        %1483 = vmatmul.f32.gmra.mxu0 %v1215
        %v1484 = vpop.f32.mrf.mxu0
        %v1485 = vadd.f32 0.0, %v1484
        %1486 = vmatmul.f32.gmra.mxu0 %v1217
        %v1487 = vpop.f32.mrf.mxu0
        %v1488 = vadd.f32 0.0, %v1487
        %1489 = vmatmul.f32.gmra.mxu0 %v1219
        %v1490 = vpop.f32.mrf.mxu0
        %v1491 = vadd.f32 0.0, %v1490
        %1492 = vmatmul.f32.gmra.mxu0 %v1221
        %v1493 = vpop.f32.mrf.mxu0
        %v1494 = vadd.f32 0.0, %v1493
        %1495 = vdwg.mxu0
        %v1496 = vadd.f32 %v1415, %v1449
        %v1497 = vadd.f32 %v1416, %v1452
        %v1498 = vadd.f32 %v1417, %v1455
        %v1499 = vadd.f32 %v1418, %v1458
        %v1500 = vadd.f32 %v1419, %v1461
        %v1501 = vadd.f32 %v1420, %v1464
        %v1502 = vadd.f32 %v1421, %v1467
        %v1503 = vadd.f32 %v1422, %v1470
        %v1504 = vadd.f32 %v1423, %v1473
        %v1505 = vadd.f32 %v1424, %v1476
        %v1506 = vadd.f32 %v1425, %v1479
        %v1507 = vadd.f32 %v1426, %v1482
        %v1508 = vadd.f32 %v1427, %v1485
        %v1509 = vadd.f32 %v1428, %v1488
        %v1510 = vadd.f32 %v1429, %v1491
        %v1511 = vadd.f32 %v1430, %v1494
        %1512 = vst.msk [vmem:[#allocation5] sm:$0xff] %vm820, %v1496
        %1513 = vst.msk [vmem:[#allocation5 + $0x8] sm:$0xff] %vm820, %v1497
        %1514 = vst.msk [vmem:[#allocation5 + $0x10] sm:$0xff] %vm820, %v1498
        %1515 = vst.msk [vmem:[#allocation5 + $0x18] sm:$0xff] %vm820, %v1499
        %1516 = vst.msk [vmem:[#allocation5 + $0x20] sm:$0xff] %vm820, %v1500
        %1517 = vst.msk [vmem:[#allocation5 + $0x28] sm:$0xff] %vm820, %v1501
        %1518 = vst.msk [vmem:[#allocation5 + $0x30] sm:$0xff] %vm820, %v1502
        %1519 = vst.msk [vmem:[#allocation5 + $0x38] sm:$0xff] %vm820, %v1503
        %1520 = vst.msk [vmem:[#allocation5 + $0x40] sm:$0xff] %vm820, %v1504
        %1521 = vst.msk [vmem:[#allocation5 + $0x48] sm:$0xff] %vm820, %v1505
        %1522 = vst.msk [vmem:[#allocation5 + $0x50] sm:$0xff] %vm820, %v1506
        %1523 = vst.msk [vmem:[#allocation5 + $0x58] sm:$0xff] %vm820, %v1507
        %1524 = vst.msk [vmem:[#allocation5 + $0x60] sm:$0xff] %vm820, %v1508
        %1525 = vst.msk [vmem:[#allocation5 + $0x68] sm:$0xff] %vm820, %v1509
        %1526 = vst.msk [vmem:[#allocation5 + $0x70] sm:$0xff] %vm820, %v1510
        %1527 = vst.msk [vmem:[#allocation5 + $0x78] sm:$0xff] %vm820, %v1511
        %1528 = vst.msk [vmem:[#allocation3] sm:$0xff] %vm1302, %v1030
        %1529 = vst.msk [vmem:[#allocation3 + $0x8] sm:$0xff] %vm1302, %v1031
        %1530 = vst.msk [vmem:[#allocation3 + $0x10] sm:$0xff] %vm1302, %v1032
        %1531 = vst.msk [vmem:[#allocation3 + $0x18] sm:$0xff] %vm1302, %v1033
        %1532 = vst.msk [vmem:[#allocation3 + $0x20] sm:$0xff] %vm1302, %v1034
        %1533 = vst.msk [vmem:[#allocation3 + $0x28] sm:$0xff] %vm1302, %v1035
        %1534 = vst.msk [vmem:[#allocation3 + $0x30] sm:$0xff] %vm1302, %v1036
        %1535 = vst.msk [vmem:[#allocation3 + $0x38] sm:$0xff] %vm1302, %v1037
        %1536 = vst.msk [vmem:[#allocation3 + $0x40] sm:$0xff] %vm1302, %v1038
        %1537 = vst.msk [vmem:[#allocation3 + $0x48] sm:$0xff] %vm1302, %v1039
        %1538 = vst.msk [vmem:[#allocation3 + $0x50] sm:$0xff] %vm1302, %v1040
        %1539 = vst.msk [vmem:[#allocation3 + $0x58] sm:$0xff] %vm1302, %v1041
        %1540 = vst.msk [vmem:[#allocation3 + $0x60] sm:$0xff] %vm1302, %v1042
        %1541 = vst.msk [vmem:[#allocation3 + $0x68] sm:$0xff] %vm1302, %v1043
        %1542 = vst.msk [vmem:[#allocation3 + $0x70] sm:$0xff] %vm1302, %v1044
        %1543 = vst.msk [vmem:[#allocation3 + $0x78] sm:$0xff] %vm1302, %v1045
        %p1544 = scmp.eq.s32.totalorder %s30, 1
        // Predicated region
        $region57: #{tpu_custom_call.1} parent=47 // pred_check
          %p1545 = pneg %p1544
        $region58: #{tpu_custom_call.1} parent=47 // pred_check_branch
          %1547 = sbr.rel (%p1545) target = $region60
        $region59: #{tpu_custom_call.1} parent=47 // pred_region
          %v1548 = vld [vmem:[#allocation4] sm:$0xff]
          %v1549 = vld [vmem:[#allocation4 + $0x8] sm:$0xff]
          %v1550 = vld [vmem:[#allocation4 + $0x10] sm:$0xff]
          %v1551 = vld [vmem:[#allocation4 + $0x18] sm:$0xff]
          %v1552 = vld [vmem:[#allocation4 + $0x20] sm:$0xff]
          %v1553 = vld [vmem:[#allocation4 + $0x28] sm:$0xff]
          %v1554 = vld [vmem:[#allocation4 + $0x30] sm:$0xff]
          %v1555 = vld [vmem:[#allocation4 + $0x38] sm:$0xff]
          %v1556 = vld [vmem:[#allocation4 + $0x40] sm:$0xff]
          %v1557 = vld [vmem:[#allocation4 + $0x48] sm:$0xff]
          %v1558 = vld [vmem:[#allocation4 + $0x50] sm:$0xff]
          %v1559 = vld [vmem:[#allocation4 + $0x58] sm:$0xff]
          %v1560 = vld [vmem:[#allocation4 + $0x60] sm:$0xff]
          %v1561 = vld [vmem:[#allocation4 + $0x68] sm:$0xff]
          %v1562 = vld [vmem:[#allocation4 + $0x70] sm:$0xff]
          %v1563 = vld [vmem:[#allocation4 + $0x78] sm:$0xff]
          %v1564 = vrcp.pop %v1548
          %v1565 = vrcp.pop %v1549
          %v1566 = vrcp.pop %v1550
          %v1567 = vrcp.pop %v1551
          %v1568 = vrcp.pop %v1552
          %v1569 = vrcp.pop %v1553
          %v1570 = vrcp.pop %v1554
          %v1571 = vrcp.pop %v1555
          %v1572 = vrcp.pop %v1556
          %v1573 = vrcp.pop %v1557
          %v1574 = vrcp.pop %v1558
          %v1575 = vrcp.pop %v1559
          %v1576 = vrcp.pop %v1560
          %v1577 = vrcp.pop %v1561
          %v1578 = vrcp.pop %v1562
          %v1579 = vrcp.pop %v1563
          %v1580 = vld [vmem:[#allocation5] sm:$0xff]
          %v1581 = vld [vmem:[#allocation5 + $0x8] sm:$0xff]
          %v1582 = vld [vmem:[#allocation5 + $0x10] sm:$0xff]
          %v1583 = vld [vmem:[#allocation5 + $0x18] sm:$0xff]
          %v1584 = vld [vmem:[#allocation5 + $0x20] sm:$0xff]
          %v1585 = vld [vmem:[#allocation5 + $0x28] sm:$0xff]
          %v1586 = vld [vmem:[#allocation5 + $0x30] sm:$0xff]
          %v1587 = vld [vmem:[#allocation5 + $0x38] sm:$0xff]
          %v1588 = vld [vmem:[#allocation5 + $0x40] sm:$0xff]
          %v1589 = vld [vmem:[#allocation5 + $0x48] sm:$0xff]
          %v1590 = vld [vmem:[#allocation5 + $0x50] sm:$0xff]
          %v1591 = vld [vmem:[#allocation5 + $0x58] sm:$0xff]
          %v1592 = vld [vmem:[#allocation5 + $0x60] sm:$0xff]
          %v1593 = vld [vmem:[#allocation5 + $0x68] sm:$0xff]
          %v1594 = vld [vmem:[#allocation5 + $0x70] sm:$0xff]
          %v1595 = vld [vmem:[#allocation5 + $0x78] sm:$0xff]
          %1597 = vset.pattern.permute.xlu0 0
          %1598 = vperm.xlu0 %1597, %v1564
          %v1599 = vpop.permute.xlu0 %1598
          %1602 = vset.pattern.permute.xlu0 0
          %1603 = vperm.xlu0 %1602, %v1565
          %v1604 = vpop.permute.xlu0 %1603
          %1607 = vset.pattern.permute.xlu0 0
          %1608 = vperm.xlu0 %1607, %v1566
          %v1609 = vpop.permute.xlu0 %1608
          %1612 = vset.pattern.permute.xlu0 0
          %1613 = vperm.xlu0 %1612, %v1567
          %v1614 = vpop.permute.xlu0 %1613
          %1617 = vset.pattern.permute.xlu0 0
          %1618 = vperm.xlu0 %1617, %v1568
          %v1619 = vpop.permute.xlu0 %1618
          %1622 = vset.pattern.permute.xlu0 0
          %1623 = vperm.xlu0 %1622, %v1569
          %v1624 = vpop.permute.xlu0 %1623
          %1627 = vset.pattern.permute.xlu0 0
          %1628 = vperm.xlu0 %1627, %v1570
          %v1629 = vpop.permute.xlu0 %1628
          %1632 = vset.pattern.permute.xlu0 0
          %1633 = vperm.xlu0 %1632, %v1571
          %v1634 = vpop.permute.xlu0 %1633
          %1637 = vset.pattern.permute.xlu0 0
          %1638 = vperm.xlu0 %1637, %v1572
          %v1639 = vpop.permute.xlu0 %1638
          %1642 = vset.pattern.permute.xlu0 0
          %1643 = vperm.xlu0 %1642, %v1573
          %v1644 = vpop.permute.xlu0 %1643
          %1647 = vset.pattern.permute.xlu0 0
          %1648 = vperm.xlu0 %1647, %v1574
          %v1649 = vpop.permute.xlu0 %1648
          %1652 = vset.pattern.permute.xlu0 0
          %1653 = vperm.xlu0 %1652, %v1575
          %v1654 = vpop.permute.xlu0 %1653
          %1657 = vset.pattern.permute.xlu0 0
          %1658 = vperm.xlu0 %1657, %v1576
          %v1659 = vpop.permute.xlu0 %1658
          %1662 = vset.pattern.permute.xlu0 0
          %1663 = vperm.xlu0 %1662, %v1577
          %v1664 = vpop.permute.xlu0 %1663
          %1667 = vset.pattern.permute.xlu0 0
          %1668 = vperm.xlu0 %1667, %v1578
          %v1669 = vpop.permute.xlu0 %1668
          %1672 = vset.pattern.permute.xlu0 0
          %1673 = vperm.xlu0 %1672, %v1579
          %v1674 = vpop.permute.xlu0 %1673
          %v1676 = vmul.f32 %v1580, %v1599
          %v1677 = vmul.f32 %v1581, %v1604
          %v1678 = vmul.f32 %v1582, %v1609
          %v1679 = vmul.f32 %v1583, %v1614
          %v1680 = vmul.f32 %v1584, %v1619
          %v1681 = vmul.f32 %v1585, %v1624
          %v1682 = vmul.f32 %v1586, %v1629
          %v1683 = vmul.f32 %v1587, %v1634
          %v1684 = vmul.f32 %v1588, %v1639
          %v1685 = vmul.f32 %v1589, %v1644
          %v1686 = vmul.f32 %v1590, %v1649
          %v1687 = vmul.f32 %v1591, %v1654
          %v1688 = vmul.f32 %v1592, %v1659
          %v1689 = vmul.f32 %v1593, %v1664
          %v1690 = vmul.f32 %v1594, %v1669
          %v1691 = vmul.f32 %v1595, %v1674
          %v1692 = vld [vmem:[#allocation6] sm:$0xff]
          %v1693 = vld [vmem:[#allocation6 + $0x8] sm:$0xff]
          %v1694 = vld [vmem:[#allocation6 + $0x10] sm:$0xff]
          %v1695 = vld [vmem:[#allocation6 + $0x18] sm:$0xff]
          %v1696 = vld [vmem:[#allocation6 + $0x20] sm:$0xff]
          %v1697 = vld [vmem:[#allocation6 + $0x28] sm:$0xff]
          %v1698 = vld [vmem:[#allocation6 + $0x30] sm:$0xff]
          %v1699 = vld [vmem:[#allocation6 + $0x38] sm:$0xff]
          %v1700 = vld [vmem:[#allocation6 + $0x40] sm:$0xff]
          %v1701 = vld [vmem:[#allocation6 + $0x48] sm:$0xff]
          %v1702 = vld [vmem:[#allocation6 + $0x50] sm:$0xff]
          %v1703 = vld [vmem:[#allocation6 + $0x58] sm:$0xff]
          %v1704 = vld [vmem:[#allocation6 + $0x60] sm:$0xff]
          %v1705 = vld [vmem:[#allocation6 + $0x68] sm:$0xff]
          %v1706 = vld [vmem:[#allocation6 + $0x70] sm:$0xff]
          %v1707 = vld [vmem:[#allocation6 + $0x78] sm:$0xff]
          %v1708 = vld [vmem:[%s436] sm:$0xff]
          %v1709 = vld [vmem:[%s436 + $0x8] sm:$0xff]
          %v1710 = vld [vmem:[%s436 + $0x10] sm:$0xff]
          %v1711 = vld [vmem:[%s436 + $0x18] sm:$0xff]
          %v1713 = vsel %vm820, %v1676, 0
          %v1716 = vsel %vm820, %v1677, 0
          %v1719 = vsel %vm820, %v1678, 0
          %v1722 = vsel %vm820, %v1679, 0
          %v1725 = vsel %vm820, %v1680, 0
          %v1728 = vsel %vm820, %v1681, 0
          %v1731 = vsel %vm820, %v1682, 0
          %v1734 = vsel %vm820, %v1683, 0
          %v1737 = vsel %vm820, %v1684, 0
          %v1740 = vsel %vm820, %v1685, 0
          %v1743 = vsel %vm820, %v1686, 0
          %v1746 = vsel %vm820, %v1687, 0
          %v1749 = vsel %vm820, %v1688, 0
          %v1752 = vsel %vm820, %v1689, 0
          %v1755 = vsel %vm820, %v1690, 0
          %v1758 = vsel %vm820, %v1691, 0
          %1760 = vmatpush.msra.mxu0 0.0
          %1761 = vmatpush.msra.mxu0 0.0
          %1762 = vmatpush.msra.mxu0 0.0
          %1763 = vmatpush.msra.mxu0 0.0
          %1764 = vmatpush.msra.mxu0 0.0
          %1765 = vmatpush.msra.mxu0 0.0
          %1766 = vmatpush.msra.mxu0 0.0
          %1767 = vmatpush.msra.mxu0 0.0
          %1768 = vmatpush.msra.mxu0 0.0
          %1769 = vmatpush.msra.mxu0 0.0
          %1770 = vmatpush.msra.mxu0 0.0
          %1771 = vmatpush.msra.mxu0 0.0
          %1772 = vmatpush.msra.mxu0 %v1711
          %1773 = vmatpush.msra.mxu0 %v1710
          %1774 = vmatpush.msra.mxu0 %v1709
          %1775 = vmatpush.msra.mxu0 %v1708
          %1776 = vmatmul.f32.gmra.mxu0 %v1713
          %v1777 = vpop.f32.mrf.mxu0
          %v1778 = vadd.f32 0.0, %v1777
          %1779 = vmatmul.f32.gmra.mxu0 %v1716
          %v1780 = vpop.f32.mrf.mxu0
          %v1781 = vadd.f32 0.0, %v1780
          %1782 = vmatmul.f32.gmra.mxu0 %v1719
          %v1783 = vpop.f32.mrf.mxu0
          %v1784 = vadd.f32 0.0, %v1783
          %1785 = vmatmul.f32.gmra.mxu0 %v1722
          %v1786 = vpop.f32.mrf.mxu0
          %v1787 = vadd.f32 0.0, %v1786
          %1788 = vmatmul.f32.gmra.mxu0 %v1725
          %v1789 = vpop.f32.mrf.mxu0
          %v1790 = vadd.f32 0.0, %v1789
          %1791 = vmatmul.f32.gmra.mxu0 %v1728
          %v1792 = vpop.f32.mrf.mxu0
          %v1793 = vadd.f32 0.0, %v1792
          %1794 = vmatmul.f32.gmra.mxu0 %v1731
          %v1795 = vpop.f32.mrf.mxu0
          %v1796 = vadd.f32 0.0, %v1795
          %1797 = vmatmul.f32.gmra.mxu0 %v1734
          %v1798 = vpop.f32.mrf.mxu0
          %v1799 = vadd.f32 0.0, %v1798
          %1800 = vmatmul.f32.gmra.mxu0 %v1737
          %v1801 = vpop.f32.mrf.mxu0
          %v1802 = vadd.f32 0.0, %v1801
          %1803 = vmatmul.f32.gmra.mxu0 %v1740
          %v1804 = vpop.f32.mrf.mxu0
          %v1805 = vadd.f32 0.0, %v1804
          %1806 = vmatmul.f32.gmra.mxu0 %v1743
          %v1807 = vpop.f32.mrf.mxu0
          %v1808 = vadd.f32 0.0, %v1807
          %1809 = vmatmul.f32.gmra.mxu0 %v1746
          %v1810 = vpop.f32.mrf.mxu0
          %v1811 = vadd.f32 0.0, %v1810
          %1812 = vmatmul.f32.gmra.mxu0 %v1749
          %v1813 = vpop.f32.mrf.mxu0
          %v1814 = vadd.f32 0.0, %v1813
          %1815 = vmatmul.f32.gmra.mxu0 %v1752
          %v1816 = vpop.f32.mrf.mxu0
          %v1817 = vadd.f32 0.0, %v1816
          %1818 = vmatmul.f32.gmra.mxu0 %v1755
          %v1819 = vpop.f32.mrf.mxu0
          %v1820 = vadd.f32 0.0, %v1819
          %1821 = vmatmul.f32.gmra.mxu0 %v1758
          %v1822 = vpop.f32.mrf.mxu0
          %v1823 = vadd.f32 0.0, %v1822
          %1824 = vdwg.mxu0
          %v1825 = vadd.f32 %v1692, %v1778
          %v1826 = vadd.f32 %v1693, %v1781
          %v1827 = vadd.f32 %v1694, %v1784
          %v1828 = vadd.f32 %v1695, %v1787
          %v1829 = vadd.f32 %v1696, %v1790
          %v1830 = vadd.f32 %v1697, %v1793
          %v1831 = vadd.f32 %v1698, %v1796
          %v1832 = vadd.f32 %v1699, %v1799
          %v1833 = vadd.f32 %v1700, %v1802
          %v1834 = vadd.f32 %v1701, %v1805
          %v1835 = vadd.f32 %v1702, %v1808
          %v1836 = vadd.f32 %v1703, %v1811
          %v1837 = vadd.f32 %v1704, %v1814
          %v1838 = vadd.f32 %v1705, %v1817
          %v1839 = vadd.f32 %v1706, %v1820
          %v1840 = vadd.f32 %v1707, %v1823
          %1841 = vst [vmem:[#allocation6] sm:$0xff] %v1825
          %1842 = vst [vmem:[#allocation6 + $0x8] sm:$0xff] %v1826
          %1843 = vst [vmem:[#allocation6 + $0x10] sm:$0xff] %v1827
          %1844 = vst [vmem:[#allocation6 + $0x18] sm:$0xff] %v1828
          %1845 = vst [vmem:[#allocation6 + $0x20] sm:$0xff] %v1829
          %1846 = vst [vmem:[#allocation6 + $0x28] sm:$0xff] %v1830
          %1847 = vst [vmem:[#allocation6 + $0x30] sm:$0xff] %v1831
          %1848 = vst [vmem:[#allocation6 + $0x38] sm:$0xff] %v1832
          %1849 = vst [vmem:[#allocation6 + $0x40] sm:$0xff] %v1833
          %1850 = vst [vmem:[#allocation6 + $0x48] sm:$0xff] %v1834
          %1851 = vst [vmem:[#allocation6 + $0x50] sm:$0xff] %v1835
          %1852 = vst [vmem:[#allocation6 + $0x58] sm:$0xff] %v1836
          %1853 = vst [vmem:[#allocation6 + $0x60] sm:$0xff] %v1837
          %1854 = vst [vmem:[#allocation6 + $0x68] sm:$0xff] %v1838
          %1855 = vst [vmem:[#allocation6 + $0x70] sm:$0xff] %v1839
          %1856 = vst [vmem:[#allocation6 + $0x78] sm:$0xff] %v1840
          %p1857 = scmp.eq.s32.totalorder %s29, 3
          // Predicated region
          $region61: #{tpu_custom_call.1} parent=59 // pred_check
            %p1858 = pneg %p1857
          $region62: #{tpu_custom_call.1} parent=59 // pred_check_branch
            %1860 = sbr.rel (%p1858) target = $region64
          $region63: #{tpu_custom_call.1} parent=59 // pred_region
            %v1861 = vld [vmem:[#allocation6] sm:$0xff]
            %v1862 = vld [vmem:[#allocation6 + $0x8] sm:$0xff]
            %v1863 = vld [vmem:[#allocation6 + $0x10] sm:$0xff]
            %v1864 = vld [vmem:[#allocation6 + $0x18] sm:$0xff]
            %v1865 = vld [vmem:[#allocation6 + $0x20] sm:$0xff]
            %v1866 = vld [vmem:[#allocation6 + $0x28] sm:$0xff]
            %v1867 = vld [vmem:[#allocation6 + $0x30] sm:$0xff]
            %v1868 = vld [vmem:[#allocation6 + $0x38] sm:$0xff]
            %v1869 = vld [vmem:[#allocation6 + $0x40] sm:$0xff]
            %v1870 = vld [vmem:[#allocation6 + $0x48] sm:$0xff]
            %v1871 = vld [vmem:[#allocation6 + $0x50] sm:$0xff]
            %v1872 = vld [vmem:[#allocation6 + $0x58] sm:$0xff]
            %v1873 = vld [vmem:[#allocation6 + $0x60] sm:$0xff]
            %v1874 = vld [vmem:[#allocation6 + $0x68] sm:$0xff]
            %v1875 = vld [vmem:[#allocation6 + $0x70] sm:$0xff]
            %v1876 = vld [vmem:[#allocation6 + $0x78] sm:$0xff]
            %v1877 = vld [vmem:[%s6] sm:$0x1]
            %v1879 = vperm.slane %v1877, 0
            %v1881 = vadd.f32 %v1861, %v1879
            %v1882 = vadd.f32 %v1862, %v1879
            %v1883 = vadd.f32 %v1863, %v1879
            %v1884 = vadd.f32 %v1864, %v1879
            %v1885 = vadd.f32 %v1865, %v1879
            %v1886 = vadd.f32 %v1866, %v1879
            %v1887 = vadd.f32 %v1867, %v1879
            %v1888 = vadd.f32 %v1868, %v1879
            %v1889 = vadd.f32 %v1869, %v1879
            %v1890 = vadd.f32 %v1870, %v1879
            %v1891 = vadd.f32 %v1871, %v1879
            %v1892 = vadd.f32 %v1872, %v1879
            %v1893 = vadd.f32 %v1873, %v1879
            %v1894 = vadd.f32 %v1874, %v1879
            %v1895 = vadd.f32 %v1875, %v1879
            %v1896 = vadd.f32 %v1876, %v1879
            %1897 = vst [vmem:[%s396] sm:$0xff] %v1881
            %1898 = vst [vmem:[%s396 + $0x8] sm:$0xff] %v1882
            %1899 = vst [vmem:[%s396 + $0x10] sm:$0xff] %v1883
            %1900 = vst [vmem:[%s396 + $0x18] sm:$0xff] %v1884
            %1901 = vst [vmem:[%s396 + $0x20] sm:$0xff] %v1885
            %1902 = vst [vmem:[%s396 + $0x28] sm:$0xff] %v1886
            %1903 = vst [vmem:[%s396 + $0x30] sm:$0xff] %v1887
            %1904 = vst [vmem:[%s396 + $0x38] sm:$0xff] %v1888
            %1905 = vst [vmem:[%s396 + $0x40] sm:$0xff] %v1889
            %1906 = vst [vmem:[%s396 + $0x48] sm:$0xff] %v1890
            %1907 = vst [vmem:[%s396 + $0x50] sm:$0xff] %v1891
            %1908 = vst [vmem:[%s396 + $0x58] sm:$0xff] %v1892
            %1909 = vst [vmem:[%s396 + $0x60] sm:$0xff] %v1893
            %1910 = vst [vmem:[%s396 + $0x68] sm:$0xff] %v1894
            %1911 = vst [vmem:[%s396 + $0x70] sm:$0xff] %v1895
            %1912 = vst [vmem:[%s396 + $0x78] sm:$0xff] %v1896
          $region64: #{tpu_custom_call.1} parent=59 // pred_fallthru
            _
        $region60: #{tpu_custom_call.1} parent=47 // pred_fallthru
          _
        %s1913 = sand.u32 %s238, 1
        %s1914 = scalar_lea.sflag [#allocation8], %s1913
        %s1915 = sand.u32 %s238, 1
        %s1916 = smul.addr %s1915, 128
        %s1917 = scalar_lea.vmem [#allocation7], %s1916
        // Predicated region
        $region65: #{tpu_custom_call.1} parent=47 // pred_check
          %p1918 = pneg %p248
        $region66: #{tpu_custom_call.1} parent=47 // pred_check_branch
          %1920 = sbr.rel (%p1918) target = $region68
        $region67: #{tpu_custom_call.1} parent=47 // pred_region
          %s1921 = smul.u32 16, %s28
          %1923 = vsyncadd %s1914, 0
          %s1924 = smul.addr %s27, 32
          %s1925 = sadd.s32 %s1921, %s1924
          %s1926 = smul.addr %s1925, 8
          %s1927 = scalar_lea.hbm %s7, %s1926
          %s1928 = sshll.u32 %s1917, 4
          %s1929 = int_to_ptr.vmem [resolvable:$true] %s1928
          %s1930 = sshll.u32 %s1927, 4
          %s1931 = int_to_ptr.hbm [resolvable:$true] %s1930
          %1936 = dma.vmem_to_hbm [thread:$0]  %s1929, 2048, %s1931, %s1914, 128, 128, 8
        $region68: #{tpu_custom_call.1} parent=47 // pred_fallthru
          _
      $region48: #{tpu_custom_call.1} parent=5 // pred_fallthru
        _
      %p1937 = scmp.le.s32.totalorder 2, %s16
      // Predicated region
      $region69: #{tpu_custom_call.1} parent=5 // pred_check
        %p1938 = pneg %p1937
      $region70: #{tpu_custom_call.1} parent=5 // pred_check_branch
        %1940 = sbr.rel (%p1938) target = $region72
      $region71: #{tpu_custom_call.1} parent=5 // pred_region
        %s1941 = ssub.s32 %s16, 2
        // Predicated region
        $region73: #{tpu_custom_call.1} parent=71 // pred_check
          %p1942 = pneg %p254
        $region74: #{tpu_custom_call.1} parent=71 // pred_check_branch
          %1944 = sbr.rel (%p1942) target = $region76
        $region75: #{tpu_custom_call.1} parent=71 // pred_region
          %s1945 = sand.u32 %s239, 1
          %s1946 = scalar_lea.sflag [#allocation8], %s1945
          %s1947 = sand.u32 %s239, 1
          %s1948 = smul.addr %s1947, 128
          %s1949 = scalar_lea.vmem [#allocation7], %s1948
          %1951 = dma.done %s1946, 2048
        $region76: #{tpu_custom_call.1} parent=71 // pred_fallthru
          _
      $region72: #{tpu_custom_call.1} parent=5 // pred_fallthru
        _
    $region6: #{tpu_custom_call.1} parent=1 // loop_footer
      %s20 = sadd.s32 1, %s16
    $region7: #{tpu_custom_call.1} parent=1 // loop_footer_branch
      %15 = sbr.rel target = $region3
    $region8: #{tpu_custom_call.1} parent=1 // loop_exit
      _
    %1952 = vsyncpa [#allocation8], 1
    %s1953 = scalar_lea.sflag [#allocation8], 1
    %1954 = vsyncpa %s1953, 1

</llo_original>
